<compile_context>
chip_gen: v5e
topology: v5e:2x2
jax: 0.10.0
libtpu: 0.0.40
codegen_flags: <defaults>
</compile_context>

<pallas_src>
import json
import numbers
import string
from functools import partial

import numpy as np
import jax
import jax.numpy as jnp
from jax import lax
from jax.experimental import pallas as pl
from jax.experimental.pallas import tpu as pltpu

ALL_CHARACTERS = string.printable
N_CHARACTERS = len(ALL_CHARACTERS)
NC_PAD = 128            # char vocab padded to one lane width for the in-kernel one-hot gather

MEM_DIM = 128           # module default; keeps every feature axis lane-dense
SUB_B = 8               # strings per grid step (one full sublane group on the MXU)
UNROLL_MAX = 32         # buckets <= this: static fully-unrolled recurrence


def registration_name(path):
    return '_'.join(str(p) for p in path)


def _vmem():
    return pl.BlockSpec(memory_space=pltpu.MemorySpace.VMEM)


def _smem():
    return pl.BlockSpec(memory_space=pltpu.MemorySpace.SMEM)


def _bucket(n, minimum=8):
    """Round n up to a power of two (>= minimum) to bound compiled variants."""
    n = max(int(n), minimum)
    return 1 << (n - 1).bit_length()


# --------------------------------------------------------------------------
# Pallas kernels
# --------------------------------------------------------------------------

def _string_lstm_kernel(maxlen_ref, ids_ref, lens_ref, table_ref, wih_ref,
                        whh_ref, b_ref, h_ref, c_sc, xg_ref,
                        *, hidden, sub_b, static_steps):
    """Batched character LSTM over SUB_B strings of one (path, length-bucket) group.

    ids are time-major interleaved: row t*SUB_B + b is step t of string b, so
    every step reads a contiguous sublane-aligned (SUB_B, 4H) slice of the
    hoisted input projection.  Gate layout (i|f|o|g); bih+bhh pre-summed
    (internally consistent — not the torch (i|f|g|o) ordering).
    """
    H, B = hidden, sub_b
    NC = table_ref.shape[0]

    # In-kernel embedding gather: one-hot (rows, NC) @ table (NC, H) on the MXU.
    iota = lax.broadcasted_iota(jnp.int32, (1, NC), 1)
    onehot = jnp.where(ids_ref[...] == iota, 1.0, 0.0).astype(jnp.bfloat16)
    x = jnp.dot(onehot, table_ref[...],
                preferred_element_type=jnp.float32).astype(jnp.bfloat16)

    # Hoisted input projection for all steps (bf16 operands, f32 accumulation).
    xg_ref[...] = (jnp.dot(x, wih_ref[...], preferred_element_type=jnp.float32)
                   + b_ref[...])

    lens = lens_ref[...]                                  # (B, 1) int32 per-row lengths

    def gate_step(t, h, c):
        off = pl.multiple_of(t * B, B)
        gates = xg_ref[pl.ds(off, B), :] + jnp.dot(
            h.astype(jnp.bfloat16), whh_ref[...],
            preferred_element_type=jnp.float32)
        sig = jax.nn.sigmoid(gates[:, :3 * H])            # i | f | o in one lane-dense push
        g = jnp.tanh(gates[:, 3 * H:])
        i, f, o = sig[:, :H], sig[:, H:2 * H], sig[:, 2 * H:]
        c_new = f * c + i * g
        h_new = o * jnp.tanh(c_new)
        valid = t < lens                                  # rows past their length hold state
        return jnp.where(valid, h_new, h), jnp.where(valid, c_new, c)

    if static_steps is not None:
        # Short bucket: static trip count, fully unrolled for LLO visibility.
        def body(t, carry):
            return gate_step(t, *carry)

        h0 = jnp.zeros((B, H), jnp.float32)
        c0 = jnp.zeros((B, H), jnp.float32)
        h, _ = lax.fori_loop(0, static_steps, body, (h0, c0), unroll=True)
        h_ref[...] = h
    else:
        # Long bucket: dynamic trip count from SMEM — padded steps are skipped.
        h_ref[...] = jnp.zeros_like(h_ref)
        c_sc[...] = jnp.zeros_like(c_sc)
        n_steps = maxlen_ref[pl.program_id(0)]

        @pl.loop(0, n_steps)
        def _(t):
            h_new, c_new = gate_step(t, h_ref[...], c_sc[...])
            h_ref[...] = h_new
            c_sc[...] = c_new


def _array_lstm_kernel(len_ref, x_ref, wih_ref, whh_ref, b_ref, wl_ref, bl_ref,
                       h_ref, c_ref, h_sc, xg_ref, *, hidden, static_steps):
    """LSTMCell over the [h, c] child rows of one array node, fused lout epilogue."""
    H = hidden
    true_len = len_ref[0]

    xg_ref[...] = (jnp.dot(x_ref[...].astype(jnp.bfloat16), wih_ref[...],
                           preferred_element_type=jnp.float32) + b_ref[...])

    def gate_step(t, h, c):
        gates = xg_ref[pl.ds(t, 1), :] + jnp.dot(
            h.astype(jnp.bfloat16), whh_ref[...],
            preferred_element_type=jnp.float32)
        sig = jax.nn.sigmoid(gates[:, :3 * H])
        g = jnp.tanh(gates[:, 3 * H:])
        i, f, o = sig[:, :H], sig[:, H:2 * H], sig[:, 2 * H:]
        c_new = f * c + i * g
        h_new = o * jnp.tanh(c_new)
        return h_new, c_new

    if static_steps is not None:
        def body(t, carry):
            h, c = carry
            h_new, c_new = gate_step(t, h, c)
            valid = t < true_len                          # masked padded children
            return jnp.where(valid, h_new, h), jnp.where(valid, c_new, c)

        init = (jnp.zeros((1, H), jnp.float32), jnp.zeros((1, H), jnp.float32))
        h, c = lax.fori_loop(0, static_steps, body, init, unroll=True)
        c_ref[...] = c
    else:
        h_sc[...] = jnp.zeros_like(h_sc)
        c_ref[...] = jnp.zeros_like(c_ref)

        @pl.loop(0, true_len)
        def _(t):
            h_new, c_new = gate_step(t, h_sc[...], c_ref[...])
            h_sc[...] = h_new
            c_ref[...] = c_new

        h = h_sc[...]

    # Fused arr_lout epilogue: h_hat = h @ Wl + bl.
    h_ref[...] = (jnp.dot(h.astype(jnp.bfloat16), wl_ref[...],
                          preferred_element_type=jnp.float32) + bl_ref[...])


def _object_kernel(hs_ref, cs_ref, wf_ref, bf_ref, wiou_ref, biou_ref,
                   wlout_ref, blout_ref, hhat_ref, c_ref, *, hidden):
    """Child-sum TreeLSTM node.  hs/cs are (n_pad, H); zero pad rows are exact no-ops."""
    H = hidden
    hs = hs_ref[...]
    cs = cs_ref[...]
    hs_bf = hs.astype(jnp.bfloat16)
    f = jax.nn.sigmoid(jnp.dot(hs_bf, wf_ref[...],
                               preferred_element_type=jnp.float32) + bf_ref[...])
    fc_sum = jnp.sum(f * cs, axis=0, keepdims=True)
    hs_bar = jnp.sum(hs, axis=0, keepdims=True)
    iou = (jnp.dot(hs_bar.astype(jnp.bfloat16), wiou_ref[...],
                   preferred_element_type=jnp.float32) + biou_ref[...])
    so = jax.nn.sigmoid(iou[:, :2 * H])                   # i | o in one push
    i, o = so[:, :H], so[:, H:2 * H]
    u = jnp.tanh(iou[:, 2 * H:])
    c = i * u + fc_sum
    h = o * jnp.tanh(c)
    hhat_ref[...] = (jnp.dot(h.astype(jnp.bfloat16), wlout_ref[...],
                             preferred_element_type=jnp.float32) + blout_ref[...])
    c_ref[...] = c


# --------------------------------------------------------------------------
# JIT wrappers (cached per shape bucket; same-shaped weights share them)
# --------------------------------------------------------------------------

@partial(jax.jit, static_argnames=("hidden", "sub_b", "l_pad", "static_steps"))
def lstm_string_batched(maxlen, ids, lens, table, wih, whh, b, *,
                        hidden, sub_b, l_pad, static_steps):
    G = ids.shape[0]
    rows = l_pad * sub_b
    grid_spec = pltpu.PrefetchScalarGridSpec(
        num_scalar_prefetch=1,                           # maxlen -> SMEM
        grid=(G,),
        in_specs=[
            pl.BlockSpec((None, rows, 1), lambda g, *_: (g, 0, 0)),        # ids
            pl.BlockSpec((None, sub_b, 1), lambda g, *_: (g, 0, 0)),       # lens
            pl.BlockSpec((NC_PAD, hidden), lambda g, *_: (0, 0)),          # char table (resident)
            pl.BlockSpec((hidden, 4 * hidden), lambda g, *_: (0, 0)),      # wih
            pl.BlockSpec((hidden, 4 * hidden), lambda g, *_: (0, 0)),      # whh
            pl.BlockSpec((1, 4 * hidden), lambda g, *_: (0, 0)),           # bias
        ],
        out_specs=pl.BlockSpec((None, sub_b, hidden), lambda g, *_: (g, 0, 0)),
        scratch_shapes=[pltpu.VMEM((sub_b, hidden), jnp.float32),          # c carry
                        pltpu.VMEM((rows, 4 * hidden), jnp.float32)],      # hoisted x@Wih
    )
    return pl.pallas_call(
        partial(_string_lstm_kernel, hidden=hidden, sub_b=sub_b,
                static_steps=static_steps),
        grid_spec=grid_spec,
        out_shape=jax.ShapeDtypeStruct((G, sub_b, hidden), jnp.float32),
        compiler_params=pltpu.CompilerParams(
            dimension_semantics=("parallel",)),          # v7x: split groups over both TCs
    )(maxlen, ids, lens, table, wih, whh, b)


@partial(jax.jit, static_argnames=("hidden", "static_steps"))
def lstm_array(x_pad, length, wih, whh, b, wl, bl, *, hidden, static_steps):
    L_pad = x_pad.shape[0]
    return pl.pallas_call(
        partial(_array_lstm_kernel, hidden=hidden, static_steps=static_steps),
        out_shape=(jax.ShapeDtypeStruct((1, hidden), jnp.float32),
                   jax.ShapeDtypeStruct((1, hidden), jnp.float32)),
        in_specs=[_smem()] + [_vmem()] * 6,
        out_specs=(_vmem(), _vmem()),
        scratch_shapes=[pltpu.VMEM((1, hidden), jnp.float32),
                        pltpu.VMEM((L_pad, 4 * hidden), jnp.float32)],
    )(length, x_pad, wih, whh, b, wl, bl)


@partial(jax.jit, static_argnames=("hidden",))
def object_embed(hs, cs, wf, bf, wiou, biou, wlout, blout, *, hidden):
    return pl.pallas_call(
        partial(_object_kernel, hidden=hidden),
        out_shape=(jax.ShapeDtypeStruct((1, hidden), jnp.float32),
                   jax.ShapeDtypeStruct((1, hidden), jnp.float32)),
        in_specs=[_vmem()] * 8,
        out_specs=(_vmem(), _vmem()),
    )(hs, cs, wf, bf, wiou, biou, wlout, blout)


# --------------------------------------------------------------------------
# Deterministic parameter factory (mimics torch default inits; bf16 MXU weights)
# --------------------------------------------------------------------------

class ParamFactory:
    def __init__(self, base_key):
        self.base_key = base_key
        self.counter = 0

    def _next_key(self):
        k = jax.random.fold_in(self.base_key, self.counter)
        self.counter += 1
        return k

    def linear(self, in_f, out_f, w_dtype=jnp.bfloat16):
        bound = 1.0 / (in_f ** 0.5)
        kw, kb = jax.random.split(self._next_key())
        w = jax.random.uniform(kw, (in_f, out_f), jnp.float32, -bound, bound)
        b = jax.random.uniform(kb, (1, out_f), jnp.float32, -bound, bound)
        return w.astype(w_dtype), b

    def lstm(self, in_f, hidden):
        # Gate layout (i|f|o|g); bih + bhh pre-summed once here.
        bound = 1.0 / (hidden ** 0.5)
        k = jax.random.split(self._next_key(), 4)
        wih = jax.random.uniform(k[0], (in_f, 4 * hidden), jnp.float32, -bound, bound)
        whh = jax.random.uniform(k[1], (hidden, 4 * hidden), jnp.float32, -bound, bound)
        bih = jax.random.uniform(k[2], (1, 4 * hidden), jnp.float32, -bound, bound)
        bhh = jax.random.uniform(k[3], (1, 4 * hidden), jnp.float32, -bound, bound)
        return wih.astype(jnp.bfloat16), whh.astype(jnp.bfloat16), bih + bhh

    def embedding(self, n, dim):
        return jax.random.normal(self._next_key(), (n, dim), jnp.float32)


# --------------------------------------------------------------------------
# JSONTreeLSTM (Pallas version)
# --------------------------------------------------------------------------

class JSONTreeLSTMPallas:
    def __init__(self, mem_dim=MEM_DIM, decode_json=False, path_length=1,
                 tie_weights_containers=False, tie_weights_primitives=False,
                 homogeneous_types=False, number_average_fraction=0.999,
                 seed=0):
        self.mem_dim = mem_dim
        self.decode_json = decode_json
        self.path_length = path_length
        self.tie_primitives = tie_weights_primitives if path_length > 0 else True
        self.tie_containers = tie_weights_containers if path_length > 0 else True
        self.homogeneous_types = homogeneous_types
        self.alpha = number_average_fraction
        self.training = True
        self.factory = ParamFactory(jax.random.PRNGKey(seed))

        H = mem_dim
        # ObjectEmbedder (shared iouh with layout (i|o|u); per-path fh / lout)
        self.obj_iouh = self.factory.linear(H, 3 * H)
        self.obj_fh = {}
        self.obj_lout = {}
        # ArrayEmbedder (shared LSTMCell(2H -> H); per-path lout, fused in-kernel)
        self.arr_cell = self.factory.lstm(2 * H, H)
        self.arr_lout = {}
        # StringEmbedder (shared char embedding padded to 128 rows, bf16; per-path LSTM)
        enc = self.factory.embedding(N_CHARACTERS, H)
        pad = jnp.zeros((NC_PAD - N_CHARACTERS, H), jnp.float32)
        self.str_encoder = jnp.concatenate([enc, pad], axis=0).astype(jnp.bfloat16)
        self.str_rnn = {}
        # NumberEmbedder (per-path Linear(1,H) + running stats) -- plain JAX
        self.num_emb = {}
        self.num_stats = {}

        self._string_cache = {}

        if self.homogeneous_types:
            self.embed_array = self.embed_object
            self.embed_number = lambda num, path: self.embed_string(str(num), path)

    # ---- tree recursion (glue) ------------------------------------------
    def _canonical(self, path):
        return tuple(p if not isinstance(p, numbers.Number) else '___list___'
                     for p in path[-self.path_length:])

    def embed_node(self, node, path=None):
        path = self._canonical(path) or ()
        if isinstance(node, dict):
            path = path if not self.tie_containers else ('___default___',)
            child_states = []
            for name, child in node.items():
                cs = self.embed_node(child, path + (name,))
                if cs is not None:
                    child_states.append(cs)
            if not child_states:
                return None
            return self.embed_object(child_states, path)
        if isinstance(node, list):
            path = path if not self.tie_containers else ('___default___',)
            child_states = []
            for i, child in enumerate(node):
                cs = self.embed_node(child, path + (i,))
                if cs:
                    child_states.append(cs)
            if not child_states:
                return None
            return self.embed_array(child_states, path)
        if isinstance(node, str):
            p = path if not self.tie_primitives else ('___default___',)
            return self.embed_string(node, p)
        if isinstance(node, numbers.Number):
            p = path if not self.tie_primitives else ('___default___',)
            return self.embed_number(node, p)
        return None

    def forward(self, node_as_json_str):
        node = json.loads(node_as_json_str) if not self.decode_json else node_as_json_str
        # Phase 1: collect + batch-embed all string leaves (one gridded kernel
        # per (path, length-bucket) group) before the tree recursion consumes them.
        self._string_cache = {}
        groups = {}
        self._collect_strings(node, ('___root___',), groups)
        self._embed_string_groups(groups)
        # Phase 2: ordinary tree recursion.
        result = self.embed_node(node, path=('___root___',))
        if result is None:
            return jnp.zeros((1, 2 * self.mem_dim), jnp.float32)
        return jnp.concatenate(result, axis=1)

    # ---- phase 1: string leaf collection / batching ----------------------
    def _collect_strings(self, node, path, groups):
        path = self._canonical(path) or ()
        if isinstance(node, dict):
            p = path if not self.tie_containers else ('___default___',)
            for name, child in node.items():
                self._collect_strings(child, p + (name,), groups)
            return
        if isinstance(node, list):
            p = path if not self.tie_containers else ('___default___',)
            for i, child in enumerate(node):
                self._collect_strings(child, p + (i,), groups)
            return
        s = None
        if isinstance(node, str):
            s = node
        elif isinstance(node, numbers.Number) and self.homogeneous_types:
            s = str(node)
        if s is None:
            return
        p = path if not self.tie_primitives else ('___default___',)
        path_str = registration_name(p)
        idx = [ALL_CHARACTERS.index(ch) for ch in s if ch in ALL_CHARACTERS]
        if not idx:
            return
        key = (path_str, _bucket(len(idx)))
        groups.setdefault(key, {})[s] = idx           # dedup identical strings per path

    def _embed_string_groups(self, groups):
        H = self.mem_dim
        for (path_str, l_pad), strings in groups.items():
            if path_str not in self.str_rnn:
                self.str_rnn[path_str] = self.factory.lstm(H, H)
            wih, whh, bsum = self.str_rnn[path_str]
            items = list(strings.items())
            B = len(items)
            B_pad = _bucket(B, SUB_B)                 # bound compiled variants
            G = B_pad // SUB_B
            ids_np = np.zeros((B_pad, l_pad), np.int32)
            lens_np = np.zeros((B_pad,), np.int32)
            for r, (_, idx) in enumerate(items):
                ids_np[r, :len(idx)] = np.asarray(idx, np.int32)
                lens_np[r] = len(idx)
            # time-major interleave within each sub-batch of SUB_B rows
            ids_np = (ids_np.reshape(G, SUB_B, l_pad)
                            .transpose(0, 2, 1)
                            .reshape(G, l_pad * SUB_B, 1))
            lens_g = lens_np.reshape(G, SUB_B, 1)
            maxlen = lens_g.max(axis=(1, 2)).astype(np.int32)
            static_steps = l_pad if l_pad <= UNROLL_MAX else None
            h = lstm_string_batched(
                jnp.asarray(maxlen), jnp.asarray(ids_np), jnp.asarray(lens_g),
                self.str_encoder, wih, whh, bsum,
                hidden=H, sub_b=SUB_B, l_pad=l_pad, static_steps=static_steps)
            h = h.reshape(B_pad, H)
            zero_c = jnp.zeros((1, H), jnp.float32)
            for r, (s, _) in enumerate(items):
                # PyTorch: (hidden.mean(dim=1) over batch of 1 == final h, zero c)
                self._string_cache[(path_str, s)] = (h[r:r + 1], zero_c)

    # ---- embedders -------------------------------------------------------
    def embed_object(self, child_states, path):
        path_str = registration_name(path)
        if path_str not in self.obj_fh:
            self.obj_fh[path_str] = self.factory.linear(self.mem_dim, self.mem_dim)
            self.obj_lout[path_str] = self.factory.linear(self.mem_dim, self.mem_dim)
        H = self.mem_dim
        n = len(child_states)
        n_pad = _bucket(n)                            # power-of-two child bucket
        hs = jnp.concatenate([h for h, _ in child_states], axis=0)
        cs = jnp.concatenate([c for _, c in child_states], axis=0)
        if n_pad > n:
            pad = jnp.zeros((n_pad - n, H), jnp.float32)
            hs = jnp.concatenate([hs, pad], axis=0)
            cs = jnp.concatenate([cs, pad], axis=0)
        wf, bf = self.obj_fh[path_str]
        wiou, biou = self.obj_iouh
        wlout, blout = self.obj_lout[path_str]
        h_hat, c = object_embed(hs, cs, wf, bf, wiou, biou, wlout, blout, hidden=H)
        return (h_hat, c)

    def embed_array(self, child_states, path):
        path_str = registration_name(path)
        if path_str not in self.arr_lout:
            self.arr_lout[path_str] = self.factory.linear(self.mem_dim, self.mem_dim)
        H = self.mem_dim
        n = len(child_states)
        L_pad = _bucket(n)
        hs = jnp.concatenate([h for h, _ in child_states], axis=0)
        cs = jnp.concatenate([c for _, c in child_states], axis=0)
        x_seq = jnp.concatenate([hs, cs], axis=1)     # (n, 2H)
        if L_pad > n:
            x_seq = jnp.concatenate(
                [x_seq, jnp.zeros((L_pad - n, 2 * H), jnp.float32)], axis=0)
        length = jnp.asarray([n], jnp.int32)
        wih, whh, bsum = self.arr_cell
        wl, bl = self.arr_lout[path_str]
        static_steps = L_pad if L_pad <= UNROLL_MAX else None
        h_hat, c = lstm_array(x_seq, length, wih, whh, bsum, wl, bl,
                              hidden=H, static_steps=static_steps)
        return (h_hat, c)

    def embed_string(self, s, path):
        path_str = registration_name(path)
        cached = self._string_cache.get((path_str, s))
        if cached is not None:
            return cached
        idx = [ALL_CHARACTERS.index(ch) for ch in s if ch in ALL_CHARACTERS]
        if not idx:
            # TODO(synk): PyTorch's nn.LSTM raises on an empty sequence; we return
            # the zero initial state instead of raising.
            z = jnp.zeros((1, self.mem_dim), jnp.float32)
            return (z, z)
        # Fallback (e.g. called outside forward): embed as a batch of one.
        groups = {(path_str, _bucket(len(idx))): {s: idx}}
        self._embed_string_groups(groups)
        return self._string_cache[(path_str, s)]

    def embed_number(self, num, path):
        path_str = registration_name(path)
        if path_str not in self.num_emb:
            self.num_emb[path_str] = self.factory.linear(1, self.mem_dim,
                                                         w_dtype=jnp.float32)
            self.num_stats[path_str] = {'mean': 0.0, 'sqmean': 1.0}
        stats = self.num_stats[path_str]
        n = float(num)
        if self.training:  # running-buffer update, scalar Python glue
            stats['mean'] = stats['mean'] * self.alpha + (1.0 - self.alpha) * n
            stats['sqmean'] = stats['sqmean'] * self.alpha + (1.0 - self.alpha) * n * n
        var = stats['sqmean'] - stats['mean'] ** 2
        denom = (var if var > 1e-6 else 1e-6) ** 0.5
        normalized = (n - stats['mean']) / denom
        w, b = self.num_emb[path_str]
        # plain JAX: a (1,1)x(1,H) broadcast is cheaper than a pallas_call dispatch
        encoded = normalized * w + b
        return (encoded, jnp.zeros((1, self.mem_dim), jnp.float32))


# --------------------------------------------------------------------------

if __name__ == "__main__":
    # Deterministic small example input (JSON tree) + PRNGKey(0)-seeded params.
    example = {
        "name": "pallas",
        "score": 3.5,
        "tags": ["tpu", "kernel", 7],
        "meta": {"depth": 2, "label": "tree"},
    }
    json_str = json.dumps(example)

    model = JSONTreeLSTMPallas(mem_dim=MEM_DIM, seed=0)
    out = model.forward(json_str)
    out = jax.block_until_ready(out)
    assert out.shape == (1, 2 * MEM_DIM), out.shape
    assert bool(jnp.all(jnp.isfinite(out)))
    print("KERNEL_OK")
</pallas_src>

<mosaic_0001>
module attributes {stable_mosaic.version = 11 : i64} {
  func.func @_string_lstm_kernel(%arg0: i32, %arg1: memref<1xi32, #tpu.memory_space<smem>>, %arg2: memref<1x64x1xi32, #tpu.memory_space<vmem>>, %arg3: memref<1x8x1xi32, #tpu.memory_space<vmem>>, %arg4: memref<128x128xbf16, #tpu.memory_space<vmem>>, %arg5: memref<128x512xbf16, #tpu.memory_space<vmem>>, %arg6: memref<128x512xbf16, #tpu.memory_space<vmem>>, %arg7: memref<1x512xf32, #tpu.memory_space<vmem>>, %arg8: memref<1x8x128xf32, #tpu.memory_space<vmem>>, %arg9: memref<8x128xf32, #tpu.memory_space<vmem>>, %arg10: memref<64x512xf32, #tpu.memory_space<vmem>>) attributes {dimension_semantics = [#tpu.dimension_semantics<parallel>], iteration_bounds = array<i64: 1>, scalar_prefetch = 1 : i64, scratch_operands = 2 : i64, tpu.core_type = #tpu.core_type<tc>, window_params = [{transform_indices = @transform_0, window_bounds = array<i64: 1, 64, 1>}, {transform_indices = @transform_1, window_bounds = array<i64: 1, 8, 1>}, {pipeline_mode = #tpu.pipeline_mode<synchronous>, transform_indices = @transform_2, window_bounds = array<i64: 128, 128>}, {pipeline_mode = #tpu.pipeline_mode<synchronous>, transform_indices = @transform_3, window_bounds = array<i64: 128, 512>}, {pipeline_mode = #tpu.pipeline_mode<synchronous>, transform_indices = @transform_4, window_bounds = array<i64: 128, 512>}, {pipeline_mode = #tpu.pipeline_mode<synchronous>, transform_indices = @transform_5, window_bounds = array<i64: 1, 512>}, {transform_indices = @transform_6, window_bounds = array<i64: 1, 8, 128>}]} {
    %0 = tpu.iota {dimensions = array<i32: 1>} : vector<1x128xi32>
    %c0 = arith.constant 0 : index
    %c0_0 = arith.constant 0 : index
    %c0_1 = arith.constant 0 : index
    %1 = vector.load %arg2[%c0, %c0_0, %c0_1] : memref<1x64x1xi32, #tpu.memory_space<vmem>>, vector<1x64x1xi32>
    %2 = vector.shape_cast %1 : vector<1x64x1xi32> to vector<64x1xi32>
    %3 = vector.broadcast %2 : vector<64x1xi32> to vector<64x128xi32>
    %4 = vector.broadcast %0 : vector<1x128xi32> to vector<64x128xi32>
    %5 = arith.cmpi eq, %3, %4 : vector<64x128xi32>
    %cst = arith.constant 1.000000e+00 : f32
    %cst_2 = arith.constant 0.000000e+00 : f32
    %6 = vector.broadcast %cst : f32 to vector<64x128xf32>
    %7 = vector.broadcast %cst_2 : f32 to vector<64x128xf32>
    %8 = arith.select %5, %6, %7 : vector<64x128xi1>, vector<64x128xf32>
    %9 = arith.truncf %8 : vector<64x128xf32> to vector<64x128xbf16>
    %c0_3 = arith.constant 0 : index
    %c0_4 = arith.constant 0 : index
    %10 = vector.load %arg4[%c0_3, %c0_4] : memref<128x128xbf16, #tpu.memory_space<vmem>>, vector<128x128xbf16>
    %cst_5 = arith.constant dense<0.000000e+00> : vector<64x128xf32>
    %11 = tpu.matmul %9, %10, %cst_5 {dimension_numbers = #tpu.dot_dimension_numbers<[1], [0], [0], [1], [0, 0, 1, 1], [], []>} : vector<64x128xbf16>, vector<128x128xbf16>, vector<64x128xf32> -> vector<64x128xf32>
    %12 = arith.truncf %11 : vector<64x128xf32> to vector<64x128xbf16>
    %c0_6 = arith.constant 0 : index
    %c0_7 = arith.constant 0 : index
    %13 = vector.load %arg5[%c0_6, %c0_7] : memref<128x512xbf16, #tpu.memory_space<vmem>>, vector<128x512xbf16>
    %cst_8 = arith.constant dense<0.000000e+00> : vector<64x512xf32>
    %14 = tpu.matmul %12, %13, %cst_8 {dimension_numbers = #tpu.dot_dimension_numbers<[1], [0], [0], [1], [0, 0, 1, 1], [], []>} : vector<64x128xbf16>, vector<128x512xbf16>, vector<64x512xf32> -> vector<64x512xf32>
    %c0_9 = arith.constant 0 : index
    %c0_10 = arith.constant 0 : index
    %15 = vector.load %arg7[%c0_9, %c0_10] : memref<1x512xf32, #tpu.memory_space<vmem>>, vector<1x512xf32>
    %16 = vector.broadcast %15 : vector<1x512xf32> to vector<64x512xf32>
    %17 = arith.addf %14, %16 : vector<64x512xf32>
    %c0_11 = arith.constant 0 : index
    %c0_12 = arith.constant 0 : index
    %18 = vector.load %arg10[%c0_11, %c0_12] : memref<64x512xf32, #tpu.memory_space<vmem>>, vector<64x512xf32>
    tpu.vector_store %arg10[%c0_11, %c0_12], %17 {strides = array<i32>} : memref<64x512xf32, #tpu.memory_space<vmem>>, vector<64x512xf32>,
    %c0_13 = arith.constant 0 : index
    %c0_14 = arith.constant 0 : index
    %c0_15 = arith.constant 0 : index
    %19 = vector.load %arg3[%c0_13, %c0_14, %c0_15] : memref<1x8x1xi32, #tpu.memory_space<vmem>>, vector<1x8x1xi32>
    %20 = vector.shape_cast %19 : vector<1x8x1xi32> to vector<8x1xi32>
    %cst_16 = arith.constant 0.000000e+00 : f32
    %21 = vector.broadcast %cst_16 : f32 to vector<8x128xf32>
    %cst_17 = arith.constant 0.000000e+00 : f32
    %22 = vector.broadcast %cst_17 : f32 to vector<8x128xf32>
    %c0_i32 = arith.constant 0 : i32
    %c8_i32 = arith.constant 8 : i32
    %23 = arith.muli %c0_i32, %c8_i32 : i32
    %24 = tpu.assume_multiple %23, 8 : i32
    %25 = arith.index_cast %24 : i32 to index
    %c0_18 = arith.constant 0 : index
    %26 = vector.load %arg10[%25, %c0_18] : memref<64x512xf32, #tpu.memory_space<vmem>>, vector<8x512xf32>
    %27 = arith.truncf %21 : vector<8x128xf32> to vector<8x128xbf16>
    %c0_19 = arith.constant 0 : index
    %c0_20 = arith.constant 0 : index
    %28 = vector.load %arg6[%c0_19, %c0_20] : memref<128x512xbf16, #tpu.memory_space<vmem>>, vector<128x512xbf16>
    %cst_21 = arith.constant dense<0.000000e+00> : vector<8x512xf32>
    %29 = tpu.matmul %27, %28, %cst_21 {dimension_numbers = #tpu.dot_dimension_numbers<[1], [0], [0], [1], [0, 0, 1, 1], [], []>} : vector<8x128xbf16>, vector<128x512xbf16>, vector<8x512xf32> -> vector<8x512xf32>
    %30 = arith.addf %26, %29 : vector<8x512xf32>
    %31 = vector.extract_strided_slice %30 {offsets = [0, 0], sizes = [8, 384], strides = [1, 1]} : vector<8x512xf32> to vector<8x384xf32>
    %32 = arith.negf %31 : vector<8x384xf32>
    %33 = math.exp %32 : vector<8x384xf32>
    %cst_22 = arith.constant 1.000000e+00 : f32
    %34 = vector.broadcast %cst_22 : f32 to vector<8x384xf32>
    %35 = arith.addf %34, %33 : vector<8x384xf32>
    %36 = arith.divf %34, %35 : vector<8x384xf32>
    %37 = vector.extract_strided_slice %30 {offsets = [0, 384], sizes = [8, 128], strides = [1, 1]} : vector<8x512xf32> to vector<8x128xf32>
    %38 = math.tanh %37 : vector<8x128xf32>
    %39 = vector.extract_strided_slice %36 {offsets = [0, 0], sizes = [8, 128], strides = [1, 1]} : vector<8x384xf32> to vector<8x128xf32>
    %40 = vector.extract_strided_slice %36 {offsets = [0, 128], sizes = [8, 128], strides = [1, 1]} : vector<8x384xf32> to vector<8x128xf32>
    %41 = vector.extract_strided_slice %36 {offsets = [0, 256], sizes = [8, 128], strides = [1, 1]} : vector<8x384xf32> to vector<8x128xf32>
    %42 = arith.mulf %40, %22 : vector<8x128xf32>
    %43 = arith.mulf %39, %38 : vector<8x128xf32>
    %44 = arith.addf %42, %43 : vector<8x128xf32>
    %45 = math.tanh %44 : vector<8x128xf32>
    %46 = arith.mulf %41, %45 : vector<8x128xf32>
    %47 = vector.broadcast %c0_i32 : i32 to vector<8x1xi32>
    %48 = arith.cmpi slt, %47, %20 : vector<8x1xi32>
    %49 = vector.shape_cast %48 : vector<8x1xi1> to vector<8x1xi1>
    %50 = vector.broadcast %49 : vector<8x1xi1> to vector<8x128xi1>
    %51 = arith.select %50, %46, %21 : vector<8x128xi1>, vector<8x128xf32>
    %52 = vector.shape_cast %48 : vector<8x1xi1> to vector<8x1xi1>
    %53 = vector.broadcast %52 : vector<8x1xi1> to vector<8x128xi1>
    %54 = arith.select %53, %44, %22 : vector<8x128xi1>, vector<8x128xf32>
    %c1_i32 = arith.constant 1 : i32
    %c8_i32_23 = arith.constant 8 : i32
    %55 = arith.muli %c1_i32, %c8_i32_23 : i32
    %56 = tpu.assume_multiple %55, 8 : i32
    %57 = arith.index_cast %56 : i32 to index
    %c0_24 = arith.constant 0 : index
    %58 = vector.load %arg10[%57, %c0_24] : memref<64x512xf32, #tpu.memory_space<vmem>>, vector<8x512xf32>
    %59 = arith.truncf %51 : vector<8x128xf32> to vector<8x128xbf16>
    %c0_25 = arith.constant 0 : index
    %c0_26 = arith.constant 0 : index
    %60 = vector.load %arg6[%c0_25, %c0_26] : memref<128x512xbf16, #tpu.memory_space<vmem>>, vector<128x512xbf16>
    %cst_27 = arith.constant dense<0.000000e+00> : vector<8x512xf32>
    %61 = tpu.matmul %59, %60, %cst_27 {dimension_numbers = #tpu.dot_dimension_numbers<[1], [0], [0], [1], [0, 0, 1, 1], [], []>} : vector<8x128xbf16>, vector<128x512xbf16>, vector<8x512xf32> -> vector<8x512xf32>
    %62 = arith.addf %58, %61 : vector<8x512xf32>
    %63 = vector.extract_strided_slice %62 {offsets = [0, 0], sizes = [8, 384], strides = [1, 1]} : vector<8x512xf32> to vector<8x384xf32>
    %64 = arith.negf %63 : vector<8x384xf32>
    %65 = math.exp %64 : vector<8x384xf32>
    %cst_28 = arith.constant 1.000000e+00 : f32
    %66 = vector.broadcast %cst_28 : f32 to vector<8x384xf32>
    %67 = arith.addf %66, %65 : vector<8x384xf32>
    %68 = arith.divf %66, %67 : vector<8x384xf32>
    %69 = vector.extract_strided_slice %62 {offsets = [0, 384], sizes = [8, 128], strides = [1, 1]} : vector<8x512xf32> to vector<8x128xf32>
    %70 = math.tanh %69 : vector<8x128xf32>
    %71 = vector.extract_strided_slice %68 {offsets = [0, 0], sizes = [8, 128], strides = [1, 1]} : vector<8x384xf32> to vector<8x128xf32>
    %72 = vector.extract_strided_slice %68 {offsets = [0, 128], sizes = [8, 128], strides = [1, 1]} : vector<8x384xf32> to vector<8x128xf32>
    %73 = vector.extract_strided_slice %68 {offsets = [0, 256], sizes = [8, 128], strides = [1, 1]} : vector<8x384xf32> to vector<8x128xf32>
    %74 = arith.mulf %72, %54 : vector<8x128xf32>
    %75 = arith.mulf %71, %70 : vector<8x128xf32>
    %76 = arith.addf %74, %75 : vector<8x128xf32>
    %77 = math.tanh %76 : vector<8x128xf32>
    %78 = arith.mulf %73, %77 : vector<8x128xf32>
    %79 = vector.broadcast %c1_i32 : i32 to vector<8x1xi32>
    %80 = arith.cmpi slt, %79, %20 : vector<8x1xi32>
    %81 = vector.shape_cast %80 : vector<8x1xi1> to vector<8x1xi1>
    %82 = vector.broadcast %81 : vector<8x1xi1> to vector<8x128xi1>
    %83 = arith.select %82, %78, %51 : vector<8x128xi1>, vector<8x128xf32>
    %84 = vector.shape_cast %80 : vector<8x1xi1> to vector<8x1xi1>
    %85 = vector.broadcast %84 : vector<8x1xi1> to vector<8x128xi1>
    %86 = arith.select %85, %76, %54 : vector<8x128xi1>, vector<8x128xf32>
    %c2_i32 = arith.constant 2 : i32
    %c8_i32_29 = arith.constant 8 : i32
    %87 = arith.muli %c2_i32, %c8_i32_29 : i32
    %88 = tpu.assume_multiple %87, 8 : i32
    %89 = arith.index_cast %88 : i32 to index
    %c0_30 = arith.constant 0 : index
    %90 = vector.load %arg10[%89, %c0_30] : memref<64x512xf32, #tpu.memory_space<vmem>>, vector<8x512xf32>
    %91 = arith.truncf %83 : vector<8x128xf32> to vector<8x128xbf16>
    %c0_31 = arith.constant 0 : index
    %c0_32 = arith.constant 0 : index
    %92 = vector.load %arg6[%c0_31, %c0_32] : memref<128x512xbf16, #tpu.memory_space<vmem>>, vector<128x512xbf16>
    %cst_33 = arith.constant dense<0.000000e+00> : vector<8x512xf32>
    %93 = tpu.matmul %91, %92, %cst_33 {dimension_numbers = #tpu.dot_dimension_numbers<[1], [0], [0], [1], [0, 0, 1, 1], [], []>} : vector<8x128xbf16>, vector<128x512xbf16>, vector<8x512xf32> -> vector<8x512xf32>
    %94 = arith.addf %90, %93 : vector<8x512xf32>
    %95 = vector.extract_strided_slice %94 {offsets = [0, 0], sizes = [8, 384], strides = [1, 1]} : vector<8x512xf32> to vector<8x384xf32>
    %96 = arith.negf %95 : vector<8x384xf32>
    %97 = math.exp %96 : vector<8x384xf32>
    %cst_34 = arith.constant 1.000000e+00 : f32
    %98 = vector.broadcast %cst_34 : f32 to vector<8x384xf32>
    %99 = arith.addf %98, %97 : vector<8x384xf32>
    %100 = arith.divf %98, %99 : vector<8x384xf32>
    %101 = vector.extract_strided_slice %94 {offsets = [0, 384], sizes = [8, 128], strides = [1, 1]} : vector<8x512xf32> to vector<8x128xf32>
    %102 = math.tanh %101 : vector<8x128xf32>
    %103 = vector.extract_strided_slice %100 {offsets = [0, 0], sizes = [8, 128], strides = [1, 1]} : vector<8x384xf32> to vector<8x128xf32>
    %104 = vector.extract_strided_slice %100 {offsets = [0, 128], sizes = [8, 128], strides = [1, 1]} : vector<8x384xf32> to vector<8x128xf32>
    %105 = vector.extract_strided_slice %100 {offsets = [0, 256], sizes = [8, 128], strides = [1, 1]} : vector<8x384xf32> to vector<8x128xf32>
    %106 = arith.mulf %104, %86 : vector<8x128xf32>
    %107 = arith.mulf %103, %102 : vector<8x128xf32>
    %108 = arith.addf %106, %107 : vector<8x128xf32>
    %109 = math.tanh %108 : vector<8x128xf32>
    %110 = arith.mulf %105, %109 : vector<8x128xf32>
    %111 = vector.broadcast %c2_i32 : i32 to vector<8x1xi32>
    %112 = arith.cmpi slt, %111, %20 : vector<8x1xi32>
    %113 = vector.shape_cast %112 : vector<8x1xi1> to vector<8x1xi1>
    %114 = vector.broadcast %113 : vector<8x1xi1> to vector<8x128xi1>
    %115 = arith.select %114, %110, %83 : vector<8x128xi1>, vector<8x128xf32>
    %116 = vector.shape_cast %112 : vector<8x1xi1> to vector<8x1xi1>
    %117 = vector.broadcast %116 : vector<8x1xi1> to vector<8x128xi1>
    %118 = arith.select %117, %108, %86 : vector<8x128xi1>, vector<8x128xf32>
    %c3_i32 = arith.constant 3 : i32
    %c8_i32_35 = arith.constant 8 : i32
    %119 = arith.muli %c3_i32, %c8_i32_35 : i32
    %120 = tpu.assume_multiple %119, 8 : i32
    %121 = arith.index_cast %120 : i32 to index
    %c0_36 = arith.constant 0 : index
    %122 = vector.load %arg10[%121, %c0_36] : memref<64x512xf32, #tpu.memory_space<vmem>>, vector<8x512xf32>
    %123 = arith.truncf %115 : vector<8x128xf32> to vector<8x128xbf16>
    %c0_37 = arith.constant 0 : index
    %c0_38 = arith.constant 0 : index
    %124 = vector.load %arg6[%c0_37, %c0_38] : memref<128x512xbf16, #tpu.memory_space<vmem>>, vector<128x512xbf16>
    %cst_39 = arith.constant dense<0.000000e+00> : vector<8x512xf32>
    %125 = tpu.matmul %123, %124, %cst_39 {dimension_numbers = #tpu.dot_dimension_numbers<[1], [0], [0], [1], [0, 0, 1, 1], [], []>} : vector<8x128xbf16>, vector<128x512xbf16>, vector<8x512xf32> -> vector<8x512xf32>
    %126 = arith.addf %122, %125 : vector<8x512xf32>
    %127 = vector.extract_strided_slice %126 {offsets = [0, 0], sizes = [8, 384], strides = [1, 1]} : vector<8x512xf32> to vector<8x384xf32>
    %128 = arith.negf %127 : vector<8x384xf32>
    %129 = math.exp %128 : vector<8x384xf32>
    %cst_40 = arith.constant 1.000000e+00 : f32
    %130 = vector.broadcast %cst_40 : f32 to vector<8x384xf32>
    %131 = arith.addf %130, %129 : vector<8x384xf32>
    %132 = arith.divf %130, %131 : vector<8x384xf32>
    %133 = vector.extract_strided_slice %126 {offsets = [0, 384], sizes = [8, 128], strides = [1, 1]} : vector<8x512xf32> to vector<8x128xf32>
    %134 = math.tanh %133 : vector<8x128xf32>
    %135 = vector.extract_strided_slice %132 {offsets = [0, 0], sizes = [8, 128], strides = [1, 1]} : vector<8x384xf32> to vector<8x128xf32>
    %136 = vector.extract_strided_slice %132 {offsets = [0, 128], sizes = [8, 128], strides = [1, 1]} : vector<8x384xf32> to vector<8x128xf32>
    %137 = vector.extract_strided_slice %132 {offsets = [0, 256], sizes = [8, 128], strides = [1, 1]} : vector<8x384xf32> to vector<8x128xf32>
    %138 = arith.mulf %136, %118 : vector<8x128xf32>
    %139 = arith.mulf %135, %134 : vector<8x128xf32>
    %140 = arith.addf %138, %139 : vector<8x128xf32>
    %141 = math.tanh %140 : vector<8x128xf32>
    %142 = arith.mulf %137, %141 : vector<8x128xf32>
    %143 = vector.broadcast %c3_i32 : i32 to vector<8x1xi32>
    %144 = arith.cmpi slt, %143, %20 : vector<8x1xi32>
    %145 = vector.shape_cast %144 : vector<8x1xi1> to vector<8x1xi1>
    %146 = vector.broadcast %145 : vector<8x1xi1> to vector<8x128xi1>
    %147 = arith.select %146, %142, %115 : vector<8x128xi1>, vector<8x128xf32>
    %148 = vector.shape_cast %144 : vector<8x1xi1> to vector<8x1xi1>
    %149 = vector.broadcast %148 : vector<8x1xi1> to vector<8x128xi1>
    %150 = arith.select %149, %140, %118 : vector<8x128xi1>, vector<8x128xf32>
    %c4_i32 = arith.constant 4 : i32
    %c8_i32_41 = arith.constant 8 : i32
    %151 = arith.muli %c4_i32, %c8_i32_41 : i32
    %152 = tpu.assume_multiple %151, 8 : i32
    %153 = arith.index_cast %152 : i32 to index
    %c0_42 = arith.constant 0 : index
    %154 = vector.load %arg10[%153, %c0_42] : memref<64x512xf32, #tpu.memory_space<vmem>>, vector<8x512xf32>
    %155 = arith.truncf %147 : vector<8x128xf32> to vector<8x128xbf16>
    %c0_43 = arith.constant 0 : index
    %c0_44 = arith.constant 0 : index
    %156 = vector.load %arg6[%c0_43, %c0_44] : memref<128x512xbf16, #tpu.memory_space<vmem>>, vector<128x512xbf16>
    %cst_45 = arith.constant dense<0.000000e+00> : vector<8x512xf32>
    %157 = tpu.matmul %155, %156, %cst_45 {dimension_numbers = #tpu.dot_dimension_numbers<[1], [0], [0], [1], [0, 0, 1, 1], [], []>} : vector<8x128xbf16>, vector<128x512xbf16>, vector<8x512xf32> -> vector<8x512xf32>
    %158 = arith.addf %154, %157 : vector<8x512xf32>
    %159 = vector.extract_strided_slice %158 {offsets = [0, 0], sizes = [8, 384], strides = [1, 1]} : vector<8x512xf32> to vector<8x384xf32>
    %160 = arith.negf %159 : vector<8x384xf32>
    %161 = math.exp %160 : vector<8x384xf32>
    %cst_46 = arith.constant 1.000000e+00 : f32
    %162 = vector.broadcast %cst_46 : f32 to vector<8x384xf32>
    %163 = arith.addf %162, %161 : vector<8x384xf32>
    %164 = arith.divf %162, %163 : vector<8x384xf32>
    %165 = vector.extract_strided_slice %158 {offsets = [0, 384], sizes = [8, 128], strides = [1, 1]} : vector<8x512xf32> to vector<8x128xf32>
    %166 = math.tanh %165 : vector<8x128xf32>
    %167 = vector.extract_strided_slice %164 {offsets = [0, 0], sizes = [8, 128], strides = [1, 1]} : vector<8x384xf32> to vector<8x128xf32>
    %168 = vector.extract_strided_slice %164 {offsets = [0, 128], sizes = [8, 128], strides = [1, 1]} : vector<8x384xf32> to vector<8x128xf32>
    %169 = vector.extract_strided_slice %164 {offsets = [0, 256], sizes = [8, 128], strides = [1, 1]} : vector<8x384xf32> to vector<8x128xf32>
    %170 = arith.mulf %168, %150 : vector<8x128xf32>
    %171 = arith.mulf %167, %166 : vector<8x128xf32>
    %172 = arith.addf %170, %171 : vector<8x128xf32>
    %173 = math.tanh %172 : vector<8x128xf32>
    %174 = arith.mulf %169, %173 : vector<8x128xf32>
    %175 = vector.broadcast %c4_i32 : i32 to vector<8x1xi32>
    %176 = arith.cmpi slt, %175, %20 : vector<8x1xi32>
    %177 = vector.shape_cast %176 : vector<8x1xi1> to vector<8x1xi1>
    %178 = vector.broadcast %177 : vector<8x1xi1> to vector<8x128xi1>
    %179 = arith.select %178, %174, %147 : vector<8x128xi1>, vector<8x128xf32>
    %180 = vector.shape_cast %176 : vector<8x1xi1> to vector<8x1xi1>
    %181 = vector.broadcast %180 : vector<8x1xi1> to vector<8x128xi1>
    %182 = arith.select %181, %172, %150 : vector<8x128xi1>, vector<8x128xf32>
    %c5_i32 = arith.constant 5 : i32
    %c8_i32_47 = arith.constant 8 : i32
    %183 = arith.muli %c5_i32, %c8_i32_47 : i32
    %184 = tpu.assume_multiple %183, 8 : i32
    %185 = arith.index_cast %184 : i32 to index
    %c0_48 = arith.constant 0 : index
    %186 = vector.load %arg10[%185, %c0_48] : memref<64x512xf32, #tpu.memory_space<vmem>>, vector<8x512xf32>
    %187 = arith.truncf %179 : vector<8x128xf32> to vector<8x128xbf16>
    %c0_49 = arith.constant 0 : index
    %c0_50 = arith.constant 0 : index
    %188 = vector.load %arg6[%c0_49, %c0_50] : memref<128x512xbf16, #tpu.memory_space<vmem>>, vector<128x512xbf16>
    %cst_51 = arith.constant dense<0.000000e+00> : vector<8x512xf32>
    %189 = tpu.matmul %187, %188, %cst_51 {dimension_numbers = #tpu.dot_dimension_numbers<[1], [0], [0], [1], [0, 0, 1, 1], [], []>} : vector<8x128xbf16>, vector<128x512xbf16>, vector<8x512xf32> -> vector<8x512xf32>
    %190 = arith.addf %186, %189 : vector<8x512xf32>
    %191 = vector.extract_strided_slice %190 {offsets = [0, 0], sizes = [8, 384], strides = [1, 1]} : vector<8x512xf32> to vector<8x384xf32>
    %192 = arith.negf %191 : vector<8x384xf32>
    %193 = math.exp %192 : vector<8x384xf32>
    %cst_52 = arith.constant 1.000000e+00 : f32
    %194 = vector.broadcast %cst_52 : f32 to vector<8x384xf32>
    %195 = arith.addf %194, %193 : vector<8x384xf32>
    %196 = arith.divf %194, %195 : vector<8x384xf32>
    %197 = vector.extract_strided_slice %190 {offsets = [0, 384], sizes = [8, 128], strides = [1, 1]} : vector<8x512xf32> to vector<8x128xf32>
    %198 = math.tanh %197 : vector<8x128xf32>
    %199 = vector.extract_strided_slice %196 {offsets = [0, 0], sizes = [8, 128], strides = [1, 1]} : vector<8x384xf32> to vector<8x128xf32>
    %200 = vector.extract_strided_slice %196 {offsets = [0, 128], sizes = [8, 128], strides = [1, 1]} : vector<8x384xf32> to vector<8x128xf32>
    %201 = vector.extract_strided_slice %196 {offsets = [0, 256], sizes = [8, 128], strides = [1, 1]} : vector<8x384xf32> to vector<8x128xf32>
    %202 = arith.mulf %200, %182 : vector<8x128xf32>
    %203 = arith.mulf %199, %198 : vector<8x128xf32>
    %204 = arith.addf %202, %203 : vector<8x128xf32>
    %205 = math.tanh %204 : vector<8x128xf32>
    %206 = arith.mulf %201, %205 : vector<8x128xf32>
    %207 = vector.broadcast %c5_i32 : i32 to vector<8x1xi32>
    %208 = arith.cmpi slt, %207, %20 : vector<8x1xi32>
    %209 = vector.shape_cast %208 : vector<8x1xi1> to vector<8x1xi1>
    %210 = vector.broadcast %209 : vector<8x1xi1> to vector<8x128xi1>
    %211 = arith.select %210, %206, %179 : vector<8x128xi1>, vector<8x128xf32>
    %212 = vector.shape_cast %208 : vector<8x1xi1> to vector<8x1xi1>
    %213 = vector.broadcast %212 : vector<8x1xi1> to vector<8x128xi1>
    %214 = arith.select %213, %204, %182 : vector<8x128xi1>, vector<8x128xf32>
    %c6_i32 = arith.constant 6 : i32
    %c8_i32_53 = arith.constant 8 : i32
    %215 = arith.muli %c6_i32, %c8_i32_53 : i32
    %216 = tpu.assume_multiple %215, 8 : i32
    %217 = arith.index_cast %216 : i32 to index
    %c0_54 = arith.constant 0 : index
    %218 = vector.load %arg10[%217, %c0_54] : memref<64x512xf32, #tpu.memory_space<vmem>>, vector<8x512xf32>
    %219 = arith.truncf %211 : vector<8x128xf32> to vector<8x128xbf16>
    %c0_55 = arith.constant 0 : index
    %c0_56 = arith.constant 0 : index
    %220 = vector.load %arg6[%c0_55, %c0_56] : memref<128x512xbf16, #tpu.memory_space<vmem>>, vector<128x512xbf16>
    %cst_57 = arith.constant dense<0.000000e+00> : vector<8x512xf32>
    %221 = tpu.matmul %219, %220, %cst_57 {dimension_numbers = #tpu.dot_dimension_numbers<[1], [0], [0], [1], [0, 0, 1, 1], [], []>} : vector<8x128xbf16>, vector<128x512xbf16>, vector<8x512xf32> -> vector<8x512xf32>
    %222 = arith.addf %218, %221 : vector<8x512xf32>
    %223 = vector.extract_strided_slice %222 {offsets = [0, 0], sizes = [8, 384], strides = [1, 1]} : vector<8x512xf32> to vector<8x384xf32>
    %224 = arith.negf %223 : vector<8x384xf32>
    %225 = math.exp %224 : vector<8x384xf32>
    %cst_58 = arith.constant 1.000000e+00 : f32
    %226 = vector.broadcast %cst_58 : f32 to vector<8x384xf32>
    %227 = arith.addf %226, %225 : vector<8x384xf32>
    %228 = arith.divf %226, %227 : vector<8x384xf32>
    %229 = vector.extract_strided_slice %222 {offsets = [0, 384], sizes = [8, 128], strides = [1, 1]} : vector<8x512xf32> to vector<8x128xf32>
    %230 = math.tanh %229 : vector<8x128xf32>
    %231 = vector.extract_strided_slice %228 {offsets = [0, 0], sizes = [8, 128], strides = [1, 1]} : vector<8x384xf32> to vector<8x128xf32>
    %232 = vector.extract_strided_slice %228 {offsets = [0, 128], sizes = [8, 128], strides = [1, 1]} : vector<8x384xf32> to vector<8x128xf32>
    %233 = vector.extract_strided_slice %228 {offsets = [0, 256], sizes = [8, 128], strides = [1, 1]} : vector<8x384xf32> to vector<8x128xf32>
    %234 = arith.mulf %232, %214 : vector<8x128xf32>
    %235 = arith.mulf %231, %230 : vector<8x128xf32>
    %236 = arith.addf %234, %235 : vector<8x128xf32>
    %237 = math.tanh %236 : vector<8x128xf32>
    %238 = arith.mulf %233, %237 : vector<8x128xf32>
    %239 = vector.broadcast %c6_i32 : i32 to vector<8x1xi32>
    %240 = arith.cmpi slt, %239, %20 : vector<8x1xi32>
    %241 = vector.shape_cast %240 : vector<8x1xi1> to vector<8x1xi1>
    %242 = vector.broadcast %241 : vector<8x1xi1> to vector<8x128xi1>
    %243 = arith.select %242, %238, %211 : vector<8x128xi1>, vector<8x128xf32>
    %244 = vector.shape_cast %240 : vector<8x1xi1> to vector<8x1xi1>
    %245 = vector.broadcast %244 : vector<8x1xi1> to vector<8x128xi1>
    %246 = arith.select %245, %236, %214 : vector<8x128xi1>, vector<8x128xf32>
    %c7_i32 = arith.constant 7 : i32
    %c8_i32_59 = arith.constant 8 : i32
    %247 = arith.muli %c7_i32, %c8_i32_59 : i32
    %248 = tpu.assume_multiple %247, 8 : i32
    %249 = arith.index_cast %248 : i32 to index
    %c0_60 = arith.constant 0 : index
    %250 = vector.load %arg10[%249, %c0_60] : memref<64x512xf32, #tpu.memory_space<vmem>>, vector<8x512xf32>
    %251 = arith.truncf %243 : vector<8x128xf32> to vector<8x128xbf16>
    %c0_61 = arith.constant 0 : index
    %c0_62 = arith.constant 0 : index
    %252 = vector.load %arg6[%c0_61, %c0_62] : memref<128x512xbf16, #tpu.memory_space<vmem>>, vector<128x512xbf16>
    %cst_63 = arith.constant dense<0.000000e+00> : vector<8x512xf32>
    %253 = tpu.matmul %251, %252, %cst_63 {dimension_numbers = #tpu.dot_dimension_numbers<[1], [0], [0], [1], [0, 0, 1, 1], [], []>} : vector<8x128xbf16>, vector<128x512xbf16>, vector<8x512xf32> -> vector<8x512xf32>
    %254 = arith.addf %250, %253 : vector<8x512xf32>
    %255 = vector.extract_strided_slice %254 {offsets = [0, 0], sizes = [8, 384], strides = [1, 1]} : vector<8x512xf32> to vector<8x384xf32>
    %256 = arith.negf %255 : vector<8x384xf32>
    %257 = math.exp %256 : vector<8x384xf32>
    %cst_64 = arith.constant 1.000000e+00 : f32
    %258 = vector.broadcast %cst_64 : f32 to vector<8x384xf32>
    %259 = arith.addf %258, %257 : vector<8x384xf32>
    %260 = arith.divf %258, %259 : vector<8x384xf32>
    %261 = vector.extract_strided_slice %254 {offsets = [0, 384], sizes = [8, 128], strides = [1, 1]} : vector<8x512xf32> to vector<8x128xf32>
    %262 = math.tanh %261 : vector<8x128xf32>
    %263 = vector.extract_strided_slice %260 {offsets = [0, 0], sizes = [8, 128], strides = [1, 1]} : vector<8x384xf32> to vector<8x128xf32>
    %264 = vector.extract_strided_slice %260 {offsets = [0, 128], sizes = [8, 128], strides = [1, 1]} : vector<8x384xf32> to vector<8x128xf32>
    %265 = vector.extract_strided_slice %260 {offsets = [0, 256], sizes = [8, 128], strides = [1, 1]} : vector<8x384xf32> to vector<8x128xf32>
    %266 = arith.mulf %264, %246 : vector<8x128xf32>
    %267 = arith.mulf %263, %262 : vector<8x128xf32>
    %268 = arith.addf %266, %267 : vector<8x128xf32>
    %269 = math.tanh %268 : vector<8x128xf32>
    %270 = arith.mulf %265, %269 : vector<8x128xf32>
    %271 = vector.broadcast %c7_i32 : i32 to vector<8x1xi32>
    %272 = arith.cmpi slt, %271, %20 : vector<8x1xi32>
    %273 = vector.shape_cast %272 : vector<8x1xi1> to vector<8x1xi1>
    %274 = vector.broadcast %273 : vector<8x1xi1> to vector<8x128xi1>
    %275 = arith.select %274, %270, %243 : vector<8x128xi1>, vector<8x128xf32>
    %276 = vector.shape_cast %272 : vector<8x1xi1> to vector<8x1xi1>
    %277 = vector.broadcast %276 : vector<8x1xi1> to vector<8x128xi1>
    %278 = arith.select %277, %268, %246 : vector<8x128xi1>, vector<8x128xf32>
    %c8_i32_65 = arith.constant 8 : i32
    %c0_66 = arith.constant 0 : index
    %c0_67 = arith.constant 0 : index
    %c0_68 = arith.constant 0 : index
    %279 = vector.load %arg8[%c0_66, %c0_67, %c0_68] : memref<1x8x128xf32, #tpu.memory_space<vmem>>, vector<1x8x128xf32>
    %280 = vector.shape_cast %279 : vector<1x8x128xf32> to vector<8x128xf32>
    %281 = vector.shape_cast %275 : vector<8x128xf32> to vector<1x8x128xf32>
    tpu.vector_store %arg8[%c0_66, %c0_67, %c0_68], %281 {strides = array<i32>} : memref<1x8x128xf32, #tpu.memory_space<vmem>>, vector<1x8x128xf32>,
    return
  }
  func.func @transform_0(%arg0: i32, %arg1: memref<1xi32, #tpu.memory_space<smem>>) -> (i32, i32, i32) {
    %c0_i32 = arith.constant 0 : i32
    %c0_i32_0 = arith.constant 0 : i32
    %c0_i32_1 = arith.constant 0 : i32
    return %arg0, %c0_i32, %c0_i32_0 : i32, i32, i32
  }
  func.func @transform_1(%arg0: i32, %arg1: memref<1xi32, #tpu.memory_space<smem>>) -> (i32, i32, i32) {
    %c0_i32 = arith.constant 0 : i32
    %c0_i32_0 = arith.constant 0 : i32
    %c0_i32_1 = arith.constant 0 : i32
    return %arg0, %c0_i32, %c0_i32_0 : i32, i32, i32
  }
  func.func @transform_2(%arg0: i32, %arg1: memref<1xi32, #tpu.memory_space<smem>>) -> (i32, i32) {
    %c0_i32 = arith.constant 0 : i32
    %c0_i32_0 = arith.constant 0 : i32
    %c0_i32_1 = arith.constant 0 : i32
    return %c0_i32, %c0_i32_0 : i32, i32
  }
  func.func @transform_3(%arg0: i32, %arg1: memref<1xi32, #tpu.memory_space<smem>>) -> (i32, i32) {
    %c0_i32 = arith.constant 0 : i32
    %c0_i32_0 = arith.constant 0 : i32
    %c0_i32_1 = arith.constant 0 : i32
    return %c0_i32, %c0_i32_0 : i32, i32
  }
  func.func @transform_4(%arg0: i32, %arg1: memref<1xi32, #tpu.memory_space<smem>>) -> (i32, i32) {
    %c0_i32 = arith.constant 0 : i32
    %c0_i32_0 = arith.constant 0 : i32
    %c0_i32_1 = arith.constant 0 : i32
    return %c0_i32, %c0_i32_0 : i32, i32
  }
  func.func @transform_5(%arg0: i32, %arg1: memref<1xi32, #tpu.memory_space<smem>>) -> (i32, i32) {
    %c0_i32 = arith.constant 0 : i32
    %c0_i32_0 = arith.constant 0 : i32
    %c0_i32_1 = arith.constant 0 : i32
    return %c0_i32, %c0_i32_0 : i32, i32
  }
  func.func @transform_6(%arg0: i32, %arg1: memref<1xi32, #tpu.memory_space<smem>>) -> (i32, i32, i32) {
    %c0_i32 = arith.constant 0 : i32
    %c0_i32_0 = arith.constant 0 : i32
    %c0_i32_1 = arith.constant 0 : i32
    return %arg0, %c0_i32, %c0_i32_0 : i32, i32, i32
  }
}

</mosaic_0001>

<llo_original>
// kernel: lstm_string_batched.1
$region0: #{lstm_string_batched.1}
  #allocation0 [shape = 'u32[]', space=smem, size = 0x4, offset = 0x4, fixed_abs, tag = 'smem constant byte address 0x4 - core index']
  #allocation1 [shape = 'u32[72,128]{1,0:T(1,128)}', space=vmem, size = 0x9000, scoped, tag = 'internal scratch']
  #allocation2 [shape = 'f32[8,128]{1,0:T(8,128)}', space=vmem, size = 0x1000, scoped, tag = 'scratch operand']
  #allocation3 [shape = 'f32[64,512]{1,0:T(8,128)}', space=vmem, size = 0x20000, scoped, tag = 'scratch operand']
  #allocation4 [shape = 's32[1]{0}', space=sflag, size = 0x4, scoped, tag = 'scoped memory for lstm_string_batched.1']
  #allocation5 [shape = 's32[1]{0:T(128)S(6)}', space=smem, size = 0x200, scoped, tag = 'prefetched SMEM operand 0']
  %s0 = inlined_call_operand.<no memory space> [shape: s32[1], index: 0, kind: input, shape index: {}]
  %s1 = inlined_call_operand.vmem [shape: s32[1,64,1], index: 1, kind: input, shape index: {}]
  %s2 = inlined_call_operand.vmem [shape: s32[1,8,1], index: 2, kind: input, shape index: {}]
  %s3 = inlined_call_operand.vmem [shape: bf16[128,128], index: 3, kind: input, shape index: {}]
  %s4 = inlined_call_operand.hbm [shape: bf16[128,512], index: 4, kind: input, shape index: {}]
  %s5 = inlined_call_operand.hbm [shape: bf16[128,512], index: 5, kind: input, shape index: {}]
  %s6 = inlined_call_operand.vmem [shape: f32[1,512], index: 6, kind: input, shape index: {}]
  %s7 = inlined_call_operand.hbm [shape: f32[1,8,128], index: 7, kind: output, shape index: {}]
  %s8 = sld [smem:[#allocation0]]
  $region42: #{lstm_string_batched.1} parent=0
    _
  %s10 = ssub.s32 1, %s8
  %s11 = scalar_select 0, %s10, %s8
  %12 = sst [smem:[#allocation5]] %s0
  $region1: #{lstm_string_batched.1} parent=0
    #allocation6 [shape = 'u8[131072]{0}', space=vmem, size = 0x20000, scoped, tag = 'input window, operand 4, single buffered']
    #allocation7 [shape = 's32[1]{0}', space=sflag, size = 0x4, scoped, tag = 'scoped memory for lstm_string_batched.1']
    #allocation8 [shape = 's32[1]{0}', space=sflag, size = 0x4, scoped, tag = 'scoped memory for lstm_string_batched.1']
    #allocation9 [shape = 'u8[131072]{0}', space=vmem, size = 0x20000, scoped, tag = 'input window, operand 5, single buffered']
    #allocation10 [shape = 's32[1]{0}', space=sflag, size = 0x4, scoped, tag = 'scoped memory for lstm_string_batched.1']
    #allocation11 [shape = 'u8[4096]{0}', space=vmem, size = 0x1000, scoped, tag = 'output window, operand 0, single buffered']
    %13 = vsyncpa [#allocation7], 0
    %14 = vsyncpa [#allocation10], 0
    %15 = vsyncpa [#allocation8], 0
    // Predicated region
    $region2: #{lstm_string_batched.1} parent=1 // pred_check
      _
    $region3: #{lstm_string_batched.1} parent=1 // pred_check_branch
      %17 = sbr.rel (0) target = $region5
    $region4: #{lstm_string_batched.1} parent=1 // pred_region
      _
    $region5: #{lstm_string_batched.1} parent=1 // pred_fallthru
      _
    // Predicated region
    $region6: #{lstm_string_batched.1} parent=1 // pred_check
      _
    $region7: #{lstm_string_batched.1} parent=1 // pred_check_branch
      %19 = sbr.rel (0) target = $region9
    $region8: #{lstm_string_batched.1} parent=1 // pred_region
      _
    $region9: #{lstm_string_batched.1} parent=1 // pred_fallthru
      _
    // Predicated region
    $region10: #{lstm_string_batched.1} parent=1 // pred_check
      _
    $region11: #{lstm_string_batched.1} parent=1 // pred_check_branch
      %21 = sbr.rel (0) target = $region13
    $region12: #{lstm_string_batched.1} parent=1 // pred_region
      _
    $region13: #{lstm_string_batched.1} parent=1 // pred_fallthru
      _
    // Predicated region
    $region14: #{lstm_string_batched.1} parent=1 // pred_check
      _
    $region15: #{lstm_string_batched.1} parent=1 // pred_check_branch
      %23 = sbr.rel (0) target = $region17
    $region16: #{lstm_string_batched.1} parent=1 // pred_region
      %25 = vsyncadd [#allocation7], 0
      %s26 = sshll.u32 %s4, 4
      %s27 = int_to_ptr.hbm [resolvable:$true] %s26
      %s28 = sshll.u32 [#allocation6], 4
      %s29 = int_to_ptr.vmem [resolvable:$true] %s28
      %34 = dma.hbm_to_vmem [thread:$0]  %s27, 4096, %s29, [#allocation7], 256, 256, 16
    $region17: #{lstm_string_batched.1} parent=1 // pred_fallthru
      _
    // Predicated region
    $region18: #{lstm_string_batched.1} parent=1 // pred_check
      _
    $region19: #{lstm_string_batched.1} parent=1 // pred_check_branch
      %36 = sbr.rel (0) target = $region21
    $region20: #{lstm_string_batched.1} parent=1 // pred_region
      %38 = vsyncadd [#allocation10], 0
      %s39 = sshll.u32 %s5, 4
      %s40 = int_to_ptr.hbm [resolvable:$true] %s39
      %s41 = sshll.u32 [#allocation9], 4
      %s42 = int_to_ptr.vmem [resolvable:$true] %s41
      %47 = dma.hbm_to_vmem [thread:$0]  %s40, 4096, %s42, [#allocation10], 256, 256, 16
    $region21: #{lstm_string_batched.1} parent=1 // pred_fallthru
      _
    // Predicated region
    $region22: #{lstm_string_batched.1} parent=1 // pred_check
      _
    $region23: #{lstm_string_batched.1} parent=1 // pred_check_branch
      %49 = sbr.rel (0) target = $region25
    $region24: #{lstm_string_batched.1} parent=1 // pred_region
      _
    $region25: #{lstm_string_batched.1} parent=1 // pred_fallthru
      _
    // Predicated region
    $region26: #{lstm_string_batched.1} parent=1 // pred_check
      _
    $region27: #{lstm_string_batched.1} parent=1 // pred_check_branch
      %51 = sbr.rel (0) target = $region29
    $region28: #{lstm_string_batched.1} parent=1 // pred_region
      %53 = dma.done [#allocation7], 4096
    $region29: #{lstm_string_batched.1} parent=1 // pred_fallthru
      _
    // Predicated region
    $region30: #{lstm_string_batched.1} parent=1 // pred_check
      _
    $region31: #{lstm_string_batched.1} parent=1 // pred_check_branch
      %55 = sbr.rel (0) target = $region33
    $region32: #{lstm_string_batched.1} parent=1 // pred_region
      %57 = dma.done [#allocation10], 4096
    $region33: #{lstm_string_batched.1} parent=1 // pred_fallthru
      _
    %v59 = vlaneseq
    %v60 = vand.u32 %v59, 127
    %v61 = vld [vmem:[%s1] sm:$0xff]
    %v62 = vld [vmem:[%s1 + $0x8] sm:$0xff]
    %v63 = vld [vmem:[%s1 + $0x10] sm:$0xff]
    %v64 = vld [vmem:[%s1 + $0x18] sm:$0xff]
    %v65 = vld [vmem:[%s1 + $0x20] sm:$0xff]
    %v66 = vld [vmem:[%s1 + $0x28] sm:$0xff]
    %v67 = vld [vmem:[%s1 + $0x30] sm:$0xff]
    %v68 = vld [vmem:[%s1 + $0x38] sm:$0xff]
    %69 = vset.pattern.permute.xlu0 0
    %70 = vperm.xlu0 %69, %v61
    %v71 = vpop.permute.xlu0 %70
    %72 = vset.pattern.permute.xlu0 0
    %73 = vperm.xlu0 %72, %v62
    %v74 = vpop.permute.xlu0 %73
    %75 = vset.pattern.permute.xlu0 0
    %76 = vperm.xlu0 %75, %v63
    %v77 = vpop.permute.xlu0 %76
    %78 = vset.pattern.permute.xlu0 0
    %79 = vperm.xlu0 %78, %v64
    %v80 = vpop.permute.xlu0 %79
    %81 = vset.pattern.permute.xlu0 0
    %82 = vperm.xlu0 %81, %v65
    %v83 = vpop.permute.xlu0 %82
    %84 = vset.pattern.permute.xlu0 0
    %85 = vperm.xlu0 %84, %v66
    %v86 = vpop.permute.xlu0 %85
    %87 = vset.pattern.permute.xlu0 0
    %88 = vperm.xlu0 %87, %v67
    %v89 = vpop.permute.xlu0 %88
    %90 = vset.pattern.permute.xlu0 0
    %91 = vperm.xlu0 %90, %v68
    %v92 = vpop.permute.xlu0 %91
    %vm93 = vcmp.eq.s32.totalorder %v71, %v60
    %vm94 = vcmp.eq.s32.totalorder %v74, %v60
    %vm95 = vcmp.eq.s32.totalorder %v77, %v60
    %vm96 = vcmp.eq.s32.totalorder %v80, %v60
    %vm97 = vcmp.eq.s32.totalorder %v83, %v60
    %vm98 = vcmp.eq.s32.totalorder %v86, %v60
    %vm99 = vcmp.eq.s32.totalorder %v89, %v60
    %vm100 = vcmp.eq.s32.totalorder %v92, %v60
    %v101 = vsel %vm93, 1.0, 0.0
    %v102 = vsel %vm94, 1.0, 0.0
    %v103 = vsel %vm95, 1.0, 0.0
    %v104 = vsel %vm96, 1.0, 0.0
    %v105 = vsel %vm97, 1.0, 0.0
    %v106 = vsel %vm98, 1.0, 0.0
    %v107 = vsel %vm99, 1.0, 0.0
    %v108 = vsel %vm100, 1.0, 0.0
    %v109 = vpack.c.bf16 %v102, %v101
    %v110 = vpack.c.bf16 %v104, %v103
    %v111 = vpack.c.bf16 %v106, %v105
    %v112 = vpack.c.bf16 %v108, %v107
    %v113 = vld [vmem:[%s3] sm:$0xf]
    %v114 = vld [vmem:[%s3 + $0x4] sm:$0xf]
    %v115 = vld [vmem:[%s3 + $0x8] sm:$0xf]
    %v116 = vld [vmem:[%s3 + $0xc] sm:$0xf]
    %v117 = vld [vmem:[%s3 + $0x10] sm:$0xf]
    %v118 = vld [vmem:[%s3 + $0x14] sm:$0xf]
    %v119 = vld [vmem:[%s3 + $0x18] sm:$0xf]
    %v120 = vld [vmem:[%s3 + $0x1c] sm:$0xf]
    %v121 = vld [vmem:[%s3 + $0x20] sm:$0xf]
    %v122 = vld [vmem:[%s3 + $0x24] sm:$0xf]
    %v123 = vld [vmem:[%s3 + $0x28] sm:$0xf]
    %v124 = vld [vmem:[%s3 + $0x2c] sm:$0xf]
    %v125 = vld [vmem:[%s3 + $0x30] sm:$0xf]
    %v126 = vld [vmem:[%s3 + $0x34] sm:$0xf]
    %v127 = vld [vmem:[%s3 + $0x38] sm:$0xf]
    %v128 = vld [vmem:[%s3 + $0x3c] sm:$0xf]
    %v145 = vunpack.c.l.b16 %v113
    %v146 = vunpack.c.l.b16 %v114
    %v147 = vunpack.c.l.b16 %v115
    %v148 = vunpack.c.l.b16 %v116
    %v149 = vunpack.c.l.b16 %v117
    %v150 = vunpack.c.l.b16 %v118
    %v151 = vunpack.c.l.b16 %v119
    %v152 = vunpack.c.l.b16 %v120
    %v153 = vunpack.c.l.b16 %v121
    %v154 = vunpack.c.l.b16 %v122
    %v155 = vunpack.c.l.b16 %v123
    %v156 = vunpack.c.l.b16 %v124
    %v157 = vunpack.c.l.b16 %v125
    %v158 = vunpack.c.l.b16 %v126
    %v159 = vunpack.c.l.b16 %v127
    %v160 = vunpack.c.l.b16 %v128
    %v161 = vpack.c.b16 %v146, %v145
    %v162 = vpack.c.b16 %v148, %v147
    %v163 = vpack.c.b16 %v150, %v149
    %v164 = vpack.c.b16 %v152, %v151
    %v165 = vpack.c.b16 %v154, %v153
    %v166 = vpack.c.b16 %v156, %v155
    %v167 = vpack.c.b16 %v158, %v157
    %v168 = vpack.c.b16 %v160, %v159
    %177 = vmatpush.bf16.msra.mxu0 %v168
    %178 = vmatpush.bf16.msra.mxu0 %v167
    %179 = vmatpush.bf16.msra.mxu0 %v166
    %180 = vmatpush.bf16.msra.mxu0 %v165
    %181 = vmatpush.bf16.msra.mxu0 %v164
    %182 = vmatpush.bf16.msra.mxu0 %v163
    %183 = vmatpush.bf16.msra.mxu0 %v162
    %184 = vmatpush.bf16.msra.mxu0 %v161
    %185 = vmatmul.bf16.gmra.mxu0 %v109
    %v186 = vpop.f32.mrf.mxu0
    %v187 = vadd.f32 0.0, %v186
    %v188 = vpop.f32.mrf.mxu0
    %v189 = vadd.f32 0.0, %v188
    %190 = vmatmul.bf16.gmra.mxu0 %v110
    %v191 = vpop.f32.mrf.mxu0
    %v192 = vadd.f32 0.0, %v191
    %v193 = vpop.f32.mrf.mxu0
    %v194 = vadd.f32 0.0, %v193
    %195 = vmatmul.bf16.gmra.mxu0 %v111
    %v196 = vpop.f32.mrf.mxu0
    %v197 = vadd.f32 0.0, %v196
    %v198 = vpop.f32.mrf.mxu0
    %v199 = vadd.f32 0.0, %v198
    %200 = vmatmul.bf16.gmra.mxu0 %v112
    %v201 = vpop.f32.mrf.mxu0
    %v202 = vadd.f32 0.0, %v201
    %v203 = vpop.f32.mrf.mxu0
    %v204 = vadd.f32 0.0, %v203
    %205 = vdwg.mxu0
    %v206 = vpack.c.bf16 %v189, %v187
    %v207 = vpack.c.bf16 %v194, %v192
    %v208 = vpack.c.bf16 %v199, %v197
    %v209 = vpack.c.bf16 %v204, %v202
    %v210 = vld [vmem:[#allocation6] sm:$0xff]
    %v211 = vld [vmem:[#allocation6 + $0x8] sm:$0xff]
    %v212 = vld [vmem:[#allocation6 + $0x10] sm:$0xff]
    %v213 = vld [vmem:[#allocation6 + $0x18] sm:$0xff]
    %v214 = vld [vmem:[#allocation6 + $0x20] sm:$0xff]
    %v215 = vld [vmem:[#allocation6 + $0x28] sm:$0xff]
    %v216 = vld [vmem:[#allocation6 + $0x30] sm:$0xff]
    %v217 = vld [vmem:[#allocation6 + $0x38] sm:$0xff]
    %v218 = vld [vmem:[#allocation6 + $0x40] sm:$0xff]
    %v219 = vld [vmem:[#allocation6 + $0x48] sm:$0xff]
    %v220 = vld [vmem:[#allocation6 + $0x50] sm:$0xff]
    %v221 = vld [vmem:[#allocation6 + $0x58] sm:$0xff]
    %v222 = vld [vmem:[#allocation6 + $0x60] sm:$0xff]
    %v223 = vld [vmem:[#allocation6 + $0x68] sm:$0xff]
    %v224 = vld [vmem:[#allocation6 + $0x70] sm:$0xff]
    %v225 = vld [vmem:[#allocation6 + $0x78] sm:$0xff]
    %v226 = vld [vmem:[#allocation6 + $0x80] sm:$0xff]
    %v227 = vld [vmem:[#allocation6 + $0x88] sm:$0xff]
    %v228 = vld [vmem:[#allocation6 + $0x90] sm:$0xff]
    %v229 = vld [vmem:[#allocation6 + $0x98] sm:$0xff]
    %v230 = vld [vmem:[#allocation6 + $0xa0] sm:$0xff]
    %v231 = vld [vmem:[#allocation6 + $0xa8] sm:$0xff]
    %v232 = vld [vmem:[#allocation6 + $0xb0] sm:$0xff]
    %v233 = vld [vmem:[#allocation6 + $0xb8] sm:$0xff]
    %v234 = vld [vmem:[#allocation6 + $0xc0] sm:$0xff]
    %v235 = vld [vmem:[#allocation6 + $0xc8] sm:$0xff]
    %v236 = vld [vmem:[#allocation6 + $0xd0] sm:$0xff]
    %v237 = vld [vmem:[#allocation6 + $0xd8] sm:$0xff]
    %v238 = vld [vmem:[#allocation6 + $0xe0] sm:$0xff]
    %v239 = vld [vmem:[#allocation6 + $0xe8] sm:$0xff]
    %v240 = vld [vmem:[#allocation6 + $0xf0] sm:$0xff]
    %v241 = vld [vmem:[#allocation6 + $0xf8] sm:$0xff]
    %v242 = vld [vmem:[%s6] sm:$0xf]
    %v244 = vperm.slane %v242, 0
    %v245 = vperm.slane %v242, 1
    %v246 = vperm.slane %v242, 2
    %v247 = vperm.slane %v242, 3
    %v284 = vunpack.c.l.b16 %v210
    %v285 = vunpack.c.h.b16 %v210
    %v286 = vunpack.c.l.b16 %v211
    %v287 = vunpack.c.h.b16 %v211
    %v288 = vunpack.c.l.b16 %v212
    %v289 = vunpack.c.h.b16 %v212
    %v290 = vunpack.c.l.b16 %v213
    %v291 = vunpack.c.h.b16 %v213
    %v292 = vunpack.c.l.b16 %v214
    %v293 = vunpack.c.h.b16 %v214
    %v294 = vunpack.c.l.b16 %v215
    %v295 = vunpack.c.h.b16 %v215
    %v296 = vunpack.c.l.b16 %v216
    %v297 = vunpack.c.h.b16 %v216
    %v298 = vunpack.c.l.b16 %v217
    %v299 = vunpack.c.h.b16 %v217
    %v300 = vunpack.c.l.b16 %v218
    %v301 = vunpack.c.h.b16 %v218
    %v302 = vunpack.c.l.b16 %v219
    %v303 = vunpack.c.h.b16 %v219
    %v304 = vunpack.c.l.b16 %v220
    %v305 = vunpack.c.h.b16 %v220
    %v306 = vunpack.c.l.b16 %v221
    %v307 = vunpack.c.h.b16 %v221
    %v308 = vunpack.c.l.b16 %v222
    %v309 = vunpack.c.h.b16 %v222
    %v310 = vunpack.c.l.b16 %v223
    %v311 = vunpack.c.h.b16 %v223
    %v312 = vunpack.c.l.b16 %v224
    %v313 = vunpack.c.h.b16 %v224
    %v314 = vunpack.c.l.b16 %v225
    %v315 = vunpack.c.h.b16 %v225
    %v316 = vunpack.c.l.b16 %v226
    %v317 = vunpack.c.h.b16 %v226
    %v318 = vunpack.c.l.b16 %v227
    %v319 = vunpack.c.h.b16 %v227
    %v320 = vunpack.c.l.b16 %v228
    %v321 = vunpack.c.h.b16 %v228
    %v322 = vunpack.c.l.b16 %v229
    %v323 = vunpack.c.h.b16 %v229
    %v324 = vunpack.c.l.b16 %v230
    %v325 = vunpack.c.h.b16 %v230
    %v326 = vunpack.c.l.b16 %v231
    %v327 = vunpack.c.h.b16 %v231
    %v328 = vunpack.c.l.b16 %v232
    %v329 = vunpack.c.h.b16 %v232
    %v330 = vunpack.c.l.b16 %v233
    %v331 = vunpack.c.h.b16 %v233
    %v332 = vunpack.c.l.b16 %v234
    %v333 = vunpack.c.h.b16 %v234
    %v334 = vunpack.c.l.b16 %v235
    %v335 = vunpack.c.h.b16 %v235
    %v336 = vunpack.c.l.b16 %v236
    %v337 = vunpack.c.h.b16 %v236
    %v338 = vunpack.c.l.b16 %v237
    %v339 = vunpack.c.h.b16 %v237
    %v340 = vunpack.c.l.b16 %v238
    %v341 = vunpack.c.h.b16 %v238
    %v342 = vunpack.c.l.b16 %v239
    %v343 = vunpack.c.h.b16 %v239
    %v344 = vunpack.c.l.b16 %v240
    %v345 = vunpack.c.h.b16 %v240
    %v346 = vunpack.c.l.b16 %v241
    %v347 = vunpack.c.h.b16 %v241
    %v348 = vpack.c.b16 %v288, %v284
    %v349 = vpack.c.b16 %v289, %v285
    %v350 = vpack.c.b16 %v290, %v286
    %v351 = vpack.c.b16 %v291, %v287
    %v352 = vpack.c.b16 %v296, %v292
    %v353 = vpack.c.b16 %v297, %v293
    %v354 = vpack.c.b16 %v298, %v294
    %v355 = vpack.c.b16 %v299, %v295
    %v356 = vpack.c.b16 %v304, %v300
    %v357 = vpack.c.b16 %v305, %v301
    %v358 = vpack.c.b16 %v306, %v302
    %v359 = vpack.c.b16 %v307, %v303
    %v360 = vpack.c.b16 %v312, %v308
    %v361 = vpack.c.b16 %v313, %v309
    %v362 = vpack.c.b16 %v314, %v310
    %v363 = vpack.c.b16 %v315, %v311
    %v364 = vpack.c.b16 %v320, %v316
    %v365 = vpack.c.b16 %v321, %v317
    %v366 = vpack.c.b16 %v322, %v318
    %v367 = vpack.c.b16 %v323, %v319
    %v368 = vpack.c.b16 %v328, %v324
    %v369 = vpack.c.b16 %v329, %v325
    %v370 = vpack.c.b16 %v330, %v326
    %v371 = vpack.c.b16 %v331, %v327
    %v372 = vpack.c.b16 %v336, %v332
    %v373 = vpack.c.b16 %v337, %v333
    %v374 = vpack.c.b16 %v338, %v334
    %v375 = vpack.c.b16 %v339, %v335
    %v376 = vpack.c.b16 %v344, %v340
    %v377 = vpack.c.b16 %v345, %v341
    %v378 = vpack.c.b16 %v346, %v342
    %v379 = vpack.c.b16 %v347, %v343
    %412 = vmatpush.bf16.msra.mxu0 %v376
    %413 = vmatpush.bf16.msra.mxu0 %v372
    %414 = vmatpush.bf16.msra.mxu0 %v368
    %415 = vmatpush.bf16.msra.mxu0 %v364
    %416 = vmatpush.bf16.msra.mxu0 %v360
    %417 = vmatpush.bf16.msra.mxu0 %v356
    %418 = vmatpush.bf16.msra.mxu0 %v352
    %419 = vmatpush.bf16.msra.mxu0 %v348
    %420 = vmatmul.bf16.gmra.mxu0 %v206
    %v421 = vpop.f32.mrf.mxu0
    %v422 = vadd.f32 %v244, %v421
    %v423 = vpop.f32.mrf.mxu0
    %v424 = vadd.f32 %v244, %v423
    %425 = vmatmul.bf16.gmra.mxu0 %v207
    %v426 = vpop.f32.mrf.mxu0
    %v427 = vadd.f32 %v244, %v426
    %v428 = vpop.f32.mrf.mxu0
    %v429 = vadd.f32 %v244, %v428
    %430 = vmatmul.bf16.gmra.mxu0 %v208
    %v431 = vpop.f32.mrf.mxu0
    %v432 = vadd.f32 %v244, %v431
    %v433 = vpop.f32.mrf.mxu0
    %v434 = vadd.f32 %v244, %v433
    %435 = vmatmul.bf16.gmra.mxu0 %v209
    %v436 = vpop.f32.mrf.mxu0
    %v437 = vadd.f32 %v244, %v436
    %v438 = vpop.f32.mrf.mxu0
    %v439 = vadd.f32 %v244, %v438
    %440 = vdwg.mxu0
    %441 = vmatpush.bf16.msra.mxu0 %v377
    %442 = vmatpush.bf16.msra.mxu0 %v373
    %443 = vmatpush.bf16.msra.mxu0 %v369
    %444 = vmatpush.bf16.msra.mxu0 %v365
    %445 = vmatpush.bf16.msra.mxu0 %v361
    %446 = vmatpush.bf16.msra.mxu0 %v357
    %447 = vmatpush.bf16.msra.mxu0 %v353
    %448 = vmatpush.bf16.msra.mxu0 %v349
    %449 = vmatmul.bf16.gmra.mxu0 %v206
    %v450 = vpop.f32.mrf.mxu0
    %v451 = vadd.f32 %v245, %v450
    %v452 = vpop.f32.mrf.mxu0
    %v453 = vadd.f32 %v245, %v452
    %454 = vmatmul.bf16.gmra.mxu0 %v207
    %v455 = vpop.f32.mrf.mxu0
    %v456 = vadd.f32 %v245, %v455
    %v457 = vpop.f32.mrf.mxu0
    %v458 = vadd.f32 %v245, %v457
    %459 = vmatmul.bf16.gmra.mxu0 %v208
    %v460 = vpop.f32.mrf.mxu0
    %v461 = vadd.f32 %v245, %v460
    %v462 = vpop.f32.mrf.mxu0
    %v463 = vadd.f32 %v245, %v462
    %464 = vmatmul.bf16.gmra.mxu0 %v209
    %v465 = vpop.f32.mrf.mxu0
    %v466 = vadd.f32 %v245, %v465
    %v467 = vpop.f32.mrf.mxu0
    %v468 = vadd.f32 %v245, %v467
    %469 = vdwg.mxu0
    %470 = vmatpush.bf16.msra.mxu0 %v378
    %471 = vmatpush.bf16.msra.mxu0 %v374
    %472 = vmatpush.bf16.msra.mxu0 %v370
    %473 = vmatpush.bf16.msra.mxu0 %v366
    %474 = vmatpush.bf16.msra.mxu0 %v362
    %475 = vmatpush.bf16.msra.mxu0 %v358
    %476 = vmatpush.bf16.msra.mxu0 %v354
    %477 = vmatpush.bf16.msra.mxu0 %v350
    %478 = vmatmul.bf16.gmra.mxu0 %v206
    %v479 = vpop.f32.mrf.mxu0
    %v480 = vadd.f32 %v246, %v479
    %v481 = vpop.f32.mrf.mxu0
    %v482 = vadd.f32 %v246, %v481
    %483 = vmatmul.bf16.gmra.mxu0 %v207
    %v484 = vpop.f32.mrf.mxu0
    %v485 = vadd.f32 %v246, %v484
    %v486 = vpop.f32.mrf.mxu0
    %v487 = vadd.f32 %v246, %v486
    %488 = vmatmul.bf16.gmra.mxu0 %v208
    %v489 = vpop.f32.mrf.mxu0
    %v490 = vadd.f32 %v246, %v489
    %v491 = vpop.f32.mrf.mxu0
    %v492 = vadd.f32 %v246, %v491
    %493 = vmatmul.bf16.gmra.mxu0 %v209
    %v494 = vpop.f32.mrf.mxu0
    %v495 = vadd.f32 %v246, %v494
    %v496 = vpop.f32.mrf.mxu0
    %v497 = vadd.f32 %v246, %v496
    %498 = vdwg.mxu0
    %499 = vmatpush.bf16.msra.mxu0 %v379
    %500 = vmatpush.bf16.msra.mxu0 %v375
    %501 = vmatpush.bf16.msra.mxu0 %v371
    %502 = vmatpush.bf16.msra.mxu0 %v367
    %503 = vmatpush.bf16.msra.mxu0 %v363
    %504 = vmatpush.bf16.msra.mxu0 %v359
    %505 = vmatpush.bf16.msra.mxu0 %v355
    %506 = vmatpush.bf16.msra.mxu0 %v351
    %507 = vmatmul.bf16.gmra.mxu0 %v206
    %v508 = vpop.f32.mrf.mxu0
    %v509 = vadd.f32 %v247, %v508
    %v510 = vpop.f32.mrf.mxu0
    %v511 = vadd.f32 %v247, %v510
    %512 = vmatmul.bf16.gmra.mxu0 %v207
    %v513 = vpop.f32.mrf.mxu0
    %v514 = vadd.f32 %v247, %v513
    %v515 = vpop.f32.mrf.mxu0
    %v516 = vadd.f32 %v247, %v515
    %517 = vmatmul.bf16.gmra.mxu0 %v208
    %v518 = vpop.f32.mrf.mxu0
    %v519 = vadd.f32 %v247, %v518
    %v520 = vpop.f32.mrf.mxu0
    %v521 = vadd.f32 %v247, %v520
    %522 = vmatmul.bf16.gmra.mxu0 %v209
    %v523 = vpop.f32.mrf.mxu0
    %v524 = vadd.f32 %v247, %v523
    %v525 = vpop.f32.mrf.mxu0
    %v526 = vadd.f32 %v247, %v525
    %527 = vdwg.mxu0
    %528 = vst [vmem:[#allocation3] sm:$0xff] %v422
    %529 = vst [vmem:[#allocation3 + $0x8] sm:$0xff] %v451
    %530 = vst [vmem:[#allocation3 + $0x10] sm:$0xff] %v480
    %531 = vst [vmem:[#allocation3 + $0x18] sm:$0xff] %v509
    %532 = vst [vmem:[#allocation3 + $0x20] sm:$0xff] %v424
    %533 = vst [vmem:[#allocation3 + $0x28] sm:$0xff] %v453
    %534 = vst [vmem:[#allocation3 + $0x30] sm:$0xff] %v482
    %535 = vst [vmem:[#allocation3 + $0x38] sm:$0xff] %v511
    %536 = vst [vmem:[#allocation3 + $0x40] sm:$0xff] %v427
    %537 = vst [vmem:[#allocation3 + $0x48] sm:$0xff] %v456
    %538 = vst [vmem:[#allocation3 + $0x50] sm:$0xff] %v485
    %539 = vst [vmem:[#allocation3 + $0x58] sm:$0xff] %v514
    %540 = vst [vmem:[#allocation3 + $0x60] sm:$0xff] %v429
    %541 = vst [vmem:[#allocation3 + $0x68] sm:$0xff] %v458
    %542 = vst [vmem:[#allocation3 + $0x70] sm:$0xff] %v487
    %543 = vst [vmem:[#allocation3 + $0x78] sm:$0xff] %v516
    %544 = vst [vmem:[#allocation3 + $0x80] sm:$0xff] %v432
    %545 = vst [vmem:[#allocation3 + $0x88] sm:$0xff] %v461
    %546 = vst [vmem:[#allocation3 + $0x90] sm:$0xff] %v490
    %547 = vst [vmem:[#allocation3 + $0x98] sm:$0xff] %v519
    %548 = vst [vmem:[#allocation3 + $0xa0] sm:$0xff] %v434
    %549 = vst [vmem:[#allocation3 + $0xa8] sm:$0xff] %v463
    %550 = vst [vmem:[#allocation3 + $0xb0] sm:$0xff] %v492
    %551 = vst [vmem:[#allocation3 + $0xb8] sm:$0xff] %v521
    %552 = vst [vmem:[#allocation3 + $0xc0] sm:$0xff] %v437
    %553 = vst [vmem:[#allocation3 + $0xc8] sm:$0xff] %v466
    %554 = vst [vmem:[#allocation3 + $0xd0] sm:$0xff] %v495
    %555 = vst [vmem:[#allocation3 + $0xd8] sm:$0xff] %v524
    %556 = vst [vmem:[#allocation3 + $0xe0] sm:$0xff] %v439
    %557 = vst [vmem:[#allocation3 + $0xe8] sm:$0xff] %v468
    %558 = vst [vmem:[#allocation3 + $0xf0] sm:$0xff] %v497
    %559 = vst [vmem:[#allocation3 + $0xf8] sm:$0xff] %v526
    %v560 = vld [vmem:[%s2] sm:$0xff]
    %s561 = smul.u32 0, 4
    %s562 = smul.addr %s561, 8
    %s563 = scalar_lea.vmem [#allocation3], %s562
    %v564 = vld [vmem:[%s563] sm:$0xff]
    %v565 = vld [vmem:[%s563 + $0x8] sm:$0xff]
    %v566 = vld [vmem:[%s563 + $0x10] sm:$0xff]
    %v567 = vld [vmem:[%s563 + $0x18] sm:$0xff]
    %v568 = vld [vmem:[#allocation9] sm:$0xff]
    %v569 = vld [vmem:[#allocation9 + $0x8] sm:$0xff]
    %v570 = vld [vmem:[#allocation9 + $0x10] sm:$0xff]
    %v571 = vld [vmem:[#allocation9 + $0x18] sm:$0xff]
    %v572 = vld [vmem:[#allocation9 + $0x20] sm:$0xff]
    %v573 = vld [vmem:[#allocation9 + $0x28] sm:$0xff]
    %v574 = vld [vmem:[#allocation9 + $0x30] sm:$0xff]
    %v575 = vld [vmem:[#allocation9 + $0x38] sm:$0xff]
    %v576 = vld [vmem:[#allocation9 + $0x40] sm:$0xff]
    %v577 = vld [vmem:[#allocation9 + $0x48] sm:$0xff]
    %v578 = vld [vmem:[#allocation9 + $0x50] sm:$0xff]
    %v579 = vld [vmem:[#allocation9 + $0x58] sm:$0xff]
    %v580 = vld [vmem:[#allocation9 + $0x60] sm:$0xff]
    %v581 = vld [vmem:[#allocation9 + $0x68] sm:$0xff]
    %v582 = vld [vmem:[#allocation9 + $0x70] sm:$0xff]
    %v583 = vld [vmem:[#allocation9 + $0x78] sm:$0xff]
    %v584 = vld [vmem:[#allocation9 + $0x80] sm:$0xff]
    %v585 = vld [vmem:[#allocation9 + $0x88] sm:$0xff]
    %v586 = vld [vmem:[#allocation9 + $0x90] sm:$0xff]
    %v587 = vld [vmem:[#allocation9 + $0x98] sm:$0xff]
    %v588 = vld [vmem:[#allocation9 + $0xa0] sm:$0xff]
    %v589 = vld [vmem:[#allocation9 + $0xa8] sm:$0xff]
    %v590 = vld [vmem:[#allocation9 + $0xb0] sm:$0xff]
    %v591 = vld [vmem:[#allocation9 + $0xb8] sm:$0xff]
    %v592 = vld [vmem:[#allocation9 + $0xc0] sm:$0xff]
    %v593 = vld [vmem:[#allocation9 + $0xc8] sm:$0xff]
    %v594 = vld [vmem:[#allocation9 + $0xd0] sm:$0xff]
    %v595 = vld [vmem:[#allocation9 + $0xd8] sm:$0xff]
    %v596 = vld [vmem:[#allocation9 + $0xe0] sm:$0xff]
    %v597 = vld [vmem:[#allocation9 + $0xe8] sm:$0xff]
    %v598 = vld [vmem:[#allocation9 + $0xf0] sm:$0xff]
    %v599 = vld [vmem:[#allocation9 + $0xf8] sm:$0xff]
    %v632 = vunpack.c.l.b16 %v568
    %v633 = vunpack.c.h.b16 %v568
    %v634 = vunpack.c.l.b16 %v569
    %v635 = vunpack.c.h.b16 %v569
    %v636 = vunpack.c.l.b16 %v570
    %v637 = vunpack.c.h.b16 %v570
    %v638 = vunpack.c.l.b16 %v571
    %v639 = vunpack.c.h.b16 %v571
    %v640 = vunpack.c.l.b16 %v572
    %v641 = vunpack.c.h.b16 %v572
    %v642 = vunpack.c.l.b16 %v573
    %v643 = vunpack.c.h.b16 %v573
    %v644 = vunpack.c.l.b16 %v574
    %v645 = vunpack.c.h.b16 %v574
    %v646 = vunpack.c.l.b16 %v575
    %v647 = vunpack.c.h.b16 %v575
    %v648 = vunpack.c.l.b16 %v576
    %v649 = vunpack.c.h.b16 %v576
    %v650 = vunpack.c.l.b16 %v577
    %v651 = vunpack.c.h.b16 %v577
    %v652 = vunpack.c.l.b16 %v578
    %v653 = vunpack.c.h.b16 %v578
    %v654 = vunpack.c.l.b16 %v579
    %v655 = vunpack.c.h.b16 %v579
    %v656 = vunpack.c.l.b16 %v580
    %v657 = vunpack.c.h.b16 %v580
    %v658 = vunpack.c.l.b16 %v581
    %v659 = vunpack.c.h.b16 %v581
    %v660 = vunpack.c.l.b16 %v582
    %v661 = vunpack.c.h.b16 %v582
    %v662 = vunpack.c.l.b16 %v583
    %v663 = vunpack.c.h.b16 %v583
    %v664 = vunpack.c.l.b16 %v584
    %v665 = vunpack.c.h.b16 %v584
    %v666 = vunpack.c.l.b16 %v585
    %v667 = vunpack.c.h.b16 %v585
    %v668 = vunpack.c.l.b16 %v586
    %v669 = vunpack.c.h.b16 %v586
    %v670 = vunpack.c.l.b16 %v587
    %v671 = vunpack.c.h.b16 %v587
    %v672 = vunpack.c.l.b16 %v588
    %v673 = vunpack.c.h.b16 %v588
    %v674 = vunpack.c.l.b16 %v589
    %v675 = vunpack.c.h.b16 %v589
    %v676 = vunpack.c.l.b16 %v590
    %v677 = vunpack.c.h.b16 %v590
    %v678 = vunpack.c.l.b16 %v591
    %v679 = vunpack.c.h.b16 %v591
    %v680 = vunpack.c.l.b16 %v592
    %v681 = vunpack.c.h.b16 %v592
    %v682 = vunpack.c.l.b16 %v593
    %v683 = vunpack.c.h.b16 %v593
    %v684 = vunpack.c.l.b16 %v594
    %v685 = vunpack.c.h.b16 %v594
    %v686 = vunpack.c.l.b16 %v595
    %v687 = vunpack.c.h.b16 %v595
    %v688 = vunpack.c.l.b16 %v596
    %v689 = vunpack.c.h.b16 %v596
    %v690 = vunpack.c.l.b16 %v597
    %v691 = vunpack.c.h.b16 %v597
    %v692 = vunpack.c.l.b16 %v598
    %v693 = vunpack.c.h.b16 %v598
    %v694 = vunpack.c.l.b16 %v599
    %v695 = vunpack.c.h.b16 %v599
    %v696 = vpack.c.b16 %v636, %v632
    %v697 = vpack.c.b16 %v637, %v633
    %v698 = vpack.c.b16 %v638, %v634
    %v699 = vpack.c.b16 %v639, %v635
    %v700 = vpack.c.b16 %v644, %v640
    %v701 = vpack.c.b16 %v645, %v641
    %v702 = vpack.c.b16 %v646, %v642
    %v703 = vpack.c.b16 %v647, %v643
    %v704 = vpack.c.b16 %v652, %v648
    %v705 = vpack.c.b16 %v653, %v649
    %v706 = vpack.c.b16 %v654, %v650
    %v707 = vpack.c.b16 %v655, %v651
    %v708 = vpack.c.b16 %v660, %v656
    %v709 = vpack.c.b16 %v661, %v657
    %v710 = vpack.c.b16 %v662, %v658
    %v711 = vpack.c.b16 %v663, %v659
    %v712 = vpack.c.b16 %v668, %v664
    %v713 = vpack.c.b16 %v669, %v665
    %v714 = vpack.c.b16 %v670, %v666
    %v715 = vpack.c.b16 %v671, %v667
    %v716 = vpack.c.b16 %v676, %v672
    %v717 = vpack.c.b16 %v677, %v673
    %v718 = vpack.c.b16 %v678, %v674
    %v719 = vpack.c.b16 %v679, %v675
    %v720 = vpack.c.b16 %v684, %v680
    %v721 = vpack.c.b16 %v685, %v681
    %v722 = vpack.c.b16 %v686, %v682
    %v723 = vpack.c.b16 %v687, %v683
    %v724 = vpack.c.b16 %v692, %v688
    %v725 = vpack.c.b16 %v693, %v689
    %v726 = vpack.c.b16 %v694, %v690
    %v727 = vpack.c.b16 %v695, %v691
    %760 = vmatpush.bf16.msra.mxu0 %v724
    %761 = vmatpush.bf16.msra.mxu0 %v720
    %762 = vmatpush.bf16.msra.mxu0 %v716
    %763 = vmatpush.bf16.msra.mxu0 %v712
    %764 = vmatpush.bf16.msra.mxu0 %v708
    %765 = vmatpush.bf16.msra.mxu0 %v704
    %766 = vmatpush.bf16.msra.mxu0 %v700
    %767 = vmatpush.bf16.msra.mxu0 %v696
    %768 = vmatmul.bf16.gmra.mxu0 0
    %v769 = vpop.f32.mrf.mxu0
    %v770 = vadd.f32 0.0, %v769
    %v771 = vpop.f32.mrf.mxu0
    %772 = vdwg.mxu0
    %773 = vmatpush.bf16.msra.mxu0 %v725
    %774 = vmatpush.bf16.msra.mxu0 %v721
    %775 = vmatpush.bf16.msra.mxu0 %v717
    %776 = vmatpush.bf16.msra.mxu0 %v713
    %777 = vmatpush.bf16.msra.mxu0 %v709
    %778 = vmatpush.bf16.msra.mxu0 %v705
    %779 = vmatpush.bf16.msra.mxu0 %v701
    %780 = vmatpush.bf16.msra.mxu0 %v697
    %781 = vmatmul.bf16.gmra.mxu0 0
    %v782 = vpop.f32.mrf.mxu0
    %v783 = vadd.f32 0.0, %v782
    %v784 = vpop.f32.mrf.mxu0
    %785 = vdwg.mxu0
    %786 = vmatpush.bf16.msra.mxu0 %v726
    %787 = vmatpush.bf16.msra.mxu0 %v722
    %788 = vmatpush.bf16.msra.mxu0 %v718
    %789 = vmatpush.bf16.msra.mxu0 %v714
    %790 = vmatpush.bf16.msra.mxu0 %v710
    %791 = vmatpush.bf16.msra.mxu0 %v706
    %792 = vmatpush.bf16.msra.mxu0 %v702
    %793 = vmatpush.bf16.msra.mxu0 %v698
    %794 = vmatmul.bf16.gmra.mxu0 0
    %v795 = vpop.f32.mrf.mxu0
    %v796 = vadd.f32 0.0, %v795
    %v797 = vpop.f32.mrf.mxu0
    %798 = vdwg.mxu0
    %799 = vmatpush.bf16.msra.mxu0 %v727
    %800 = vmatpush.bf16.msra.mxu0 %v723
    %801 = vmatpush.bf16.msra.mxu0 %v719
    %802 = vmatpush.bf16.msra.mxu0 %v715
    %803 = vmatpush.bf16.msra.mxu0 %v711
    %804 = vmatpush.bf16.msra.mxu0 %v707
    %805 = vmatpush.bf16.msra.mxu0 %v703
    %806 = vmatpush.bf16.msra.mxu0 %v699
    %807 = vmatmul.bf16.gmra.mxu0 0
    %v808 = vpop.f32.mrf.mxu0
    %v809 = vadd.f32 0.0, %v808
    %v810 = vpop.f32.mrf.mxu0
    %811 = vdwg.mxu0
    %v812 = vadd.f32 %v564, %v770
    %v813 = vadd.f32 %v565, %v783
    %v814 = vadd.f32 %v566, %v796
    %v815 = vadd.f32 %v567, %v809
    %v816 = vxor.u32 %v812, 2147483648
    %v817 = vxor.u32 %v813, 2147483648
    %v818 = vxor.u32 %v814, 2147483648
    %v819 = vmul.f32 %v816, 1.442695
    %v820 = vpow.pop %v819
    %v821 = vmul.f32 %v817, 1.442695
    %v822 = vpow.pop %v821
    %v823 = vmul.f32 %v818, 1.442695
    %v824 = vpow.pop %v823
    %v825 = vadd.f32 %v820, 1.0
    %v826 = vadd.f32 %v822, 1.0
    %v827 = vadd.f32 %v824, 1.0
    %v828 = vrcp.pop %v825
    %v829 = vmul.f32 %v825, %v828
    %v830 = vsub.f32 1.0, %v829
    %v831 = vmul.f32 %v828, %v830
    %v832 = vadd.f32 %v828, %v831
    %vm833 = vweird.f32 %v825
    %vm834 = vweird.f32 %v828
    %vm835 = vmor %vm833, %vm834
    %v836 = vsel %vm835, %v828, %v832
    %v837 = vand.u32 2147483647, %v825
    %vm838 = vcmp.eq.f32.partialorder %v837, 8.507059e+37
    %v839 = vand.u32 %v825, 2147483648
    %v840 = vor.u32 1.1754944e-38, %v839
    %v841 = vsel %vm838, %v840, %v836
    %v842 = vmul.f32 1.0, %v841
    %v843 = vrcp.pop %v826
    %v844 = vmul.f32 %v826, %v843
    %v845 = vsub.f32 1.0, %v844
    %v846 = vmul.f32 %v843, %v845
    %v847 = vadd.f32 %v843, %v846
    %vm848 = vweird.f32 %v826
    %vm849 = vweird.f32 %v843
    %vm850 = vmor %vm848, %vm849
    %v851 = vsel %vm850, %v843, %v847
    %v852 = vand.u32 2147483647, %v826
    %vm853 = vcmp.eq.f32.partialorder %v852, 8.507059e+37
    %v854 = vand.u32 %v826, 2147483648
    %v855 = vor.u32 1.1754944e-38, %v854
    %v856 = vsel %vm853, %v855, %v851
    %v857 = vmul.f32 1.0, %v856
    %v858 = vrcp.pop %v827
    %v859 = vmul.f32 %v827, %v858
    %v860 = vsub.f32 1.0, %v859
    %v861 = vmul.f32 %v858, %v860
    %v862 = vadd.f32 %v858, %v861
    %vm863 = vweird.f32 %v827
    %vm864 = vweird.f32 %v858
    %vm865 = vmor %vm863, %vm864
    %v866 = vsel %vm865, %v858, %v862
    %v867 = vand.u32 2147483647, %v827
    %vm868 = vcmp.eq.f32.partialorder %v867, 8.507059e+37
    %v869 = vand.u32 %v827, 2147483648
    %v870 = vor.u32 1.1754944e-38, %v869
    %v871 = vsel %vm868, %v870, %v866
    %v872 = vmul.f32 1.0, %v871
    %v873 = vtanh.pop %v815
    %v874 = vmul.f32 %v857, 0.0
    %v875 = vmul.f32 %v842, %v873
    %v876 = vadd.f32 %v874, %v875
    %v877 = vtanh.pop %v876
    %v878 = vmul.f32 %v872, %v877
    %vm879 = vcmp.gt.s32.totalorder %v560, 0
    %v880 = vsel %vm879, 1, 0
    %881 = vset.pattern.permute.xlu0 0
    %882 = vperm.xlu0 %881, %v880
    %v883 = vpop.permute.xlu0 %882
    %vm884 = vcmp.eq.s32.totalorder %v883, 1
    %v885 = vsel %vm884, %v878, 0.0
    %v886 = vsel %vm884, %v876, 0.0
    %s887 = smul.u32 1, 4
    %s888 = smul.addr %s887, 8
    %s889 = scalar_lea.vmem [#allocation3], %s888
    %v890 = vld [vmem:[%s889] sm:$0xff]
    %v891 = vld [vmem:[%s889 + $0x8] sm:$0xff]
    %v892 = vld [vmem:[%s889 + $0x10] sm:$0xff]
    %v893 = vld [vmem:[%s889 + $0x18] sm:$0xff]
    %v894 = vpack.c.bf16 %v885, %v885
    %895 = vmatpush.bf16.msra.mxu0 %v724
    %896 = vmatpush.bf16.msra.mxu0 %v720
    %897 = vmatpush.bf16.msra.mxu0 %v716
    %898 = vmatpush.bf16.msra.mxu0 %v712
    %899 = vmatpush.bf16.msra.mxu0 %v708
    %900 = vmatpush.bf16.msra.mxu0 %v704
    %901 = vmatpush.bf16.msra.mxu0 %v700
    %902 = vmatpush.bf16.msra.mxu0 %v696
    %903 = vmatmul.bf16.gmra.mxu0 %v894
    %v904 = vpop.f32.mrf.mxu0
    %v905 = vadd.f32 0.0, %v904
    %v906 = vpop.f32.mrf.mxu0
    %907 = vdwg.mxu0
    %908 = vmatpush.bf16.msra.mxu0 %v725
    %909 = vmatpush.bf16.msra.mxu0 %v721
    %910 = vmatpush.bf16.msra.mxu0 %v717
    %911 = vmatpush.bf16.msra.mxu0 %v713
    %912 = vmatpush.bf16.msra.mxu0 %v709
    %913 = vmatpush.bf16.msra.mxu0 %v705
    %914 = vmatpush.bf16.msra.mxu0 %v701
    %915 = vmatpush.bf16.msra.mxu0 %v697
    %916 = vmatmul.bf16.gmra.mxu0 %v894
    %v917 = vpop.f32.mrf.mxu0
    %v918 = vadd.f32 0.0, %v917
    %v919 = vpop.f32.mrf.mxu0
    %920 = vdwg.mxu0
    %921 = vmatpush.bf16.msra.mxu0 %v726
    %922 = vmatpush.bf16.msra.mxu0 %v722
    %923 = vmatpush.bf16.msra.mxu0 %v718
    %924 = vmatpush.bf16.msra.mxu0 %v714
    %925 = vmatpush.bf16.msra.mxu0 %v710
    %926 = vmatpush.bf16.msra.mxu0 %v706
    %927 = vmatpush.bf16.msra.mxu0 %v702
    %928 = vmatpush.bf16.msra.mxu0 %v698
    %929 = vmatmul.bf16.gmra.mxu0 %v894
    %v930 = vpop.f32.mrf.mxu0
    %v931 = vadd.f32 0.0, %v930
    %v932 = vpop.f32.mrf.mxu0
    %933 = vdwg.mxu0
    %934 = vmatpush.bf16.msra.mxu0 %v727
    %935 = vmatpush.bf16.msra.mxu0 %v723
    %936 = vmatpush.bf16.msra.mxu0 %v719
    %937 = vmatpush.bf16.msra.mxu0 %v715
    %938 = vmatpush.bf16.msra.mxu0 %v711
    %939 = vmatpush.bf16.msra.mxu0 %v707
    %940 = vmatpush.bf16.msra.mxu0 %v703
    %941 = vmatpush.bf16.msra.mxu0 %v699
    %942 = vmatmul.bf16.gmra.mxu0 %v894
    %v943 = vpop.f32.mrf.mxu0
    %v944 = vadd.f32 0.0, %v943
    %v945 = vpop.f32.mrf.mxu0
    %946 = vdwg.mxu0
    %v947 = vadd.f32 %v890, %v905
    %v948 = vadd.f32 %v891, %v918
    %v949 = vadd.f32 %v892, %v931
    %v950 = vadd.f32 %v893, %v944
    %v951 = vxor.u32 %v947, 2147483648
    %v952 = vxor.u32 %v948, 2147483648
    %v953 = vxor.u32 %v949, 2147483648
    %v954 = vmul.f32 %v951, 1.442695
    %v955 = vpow.pop %v954
    %v956 = vmul.f32 %v952, 1.442695
    %v957 = vpow.pop %v956
    %v958 = vmul.f32 %v953, 1.442695
    %v959 = vpow.pop %v958
    %v960 = vadd.f32 %v955, 1.0
    %v961 = vadd.f32 %v957, 1.0
    %v962 = vadd.f32 %v959, 1.0
    %v963 = vrcp.pop %v960
    %v964 = vmul.f32 %v960, %v963
    %v965 = vsub.f32 1.0, %v964
    %v966 = vmul.f32 %v963, %v965
    %v967 = vadd.f32 %v963, %v966
    %vm968 = vweird.f32 %v960
    %vm969 = vweird.f32 %v963
    %vm970 = vmor %vm968, %vm969
    %v971 = vsel %vm970, %v963, %v967
    %v972 = vand.u32 2147483647, %v960
    %vm973 = vcmp.eq.f32.partialorder %v972, 8.507059e+37
    %v974 = vand.u32 %v960, 2147483648
    %v975 = vor.u32 1.1754944e-38, %v974
    %v976 = vsel %vm973, %v975, %v971
    %v977 = vmul.f32 1.0, %v976
    %v978 = vrcp.pop %v961
    %v979 = vmul.f32 %v961, %v978
    %v980 = vsub.f32 1.0, %v979
    %v981 = vmul.f32 %v978, %v980
    %v982 = vadd.f32 %v978, %v981
    %vm983 = vweird.f32 %v961
    %vm984 = vweird.f32 %v978
    %vm985 = vmor %vm983, %vm984
    %v986 = vsel %vm985, %v978, %v982
    %v987 = vand.u32 2147483647, %v961
    %vm988 = vcmp.eq.f32.partialorder %v987, 8.507059e+37
    %v989 = vand.u32 %v961, 2147483648
    %v990 = vor.u32 1.1754944e-38, %v989
    %v991 = vsel %vm988, %v990, %v986
    %v992 = vmul.f32 1.0, %v991
    %v993 = vrcp.pop %v962
    %v994 = vmul.f32 %v962, %v993
    %v995 = vsub.f32 1.0, %v994
    %v996 = vmul.f32 %v993, %v995
    %v997 = vadd.f32 %v993, %v996
    %vm998 = vweird.f32 %v962
    %vm999 = vweird.f32 %v993
    %vm1000 = vmor %vm998, %vm999
    %v1001 = vsel %vm1000, %v993, %v997
    %v1002 = vand.u32 2147483647, %v962
    %vm1003 = vcmp.eq.f32.partialorder %v1002, 8.507059e+37
    %v1004 = vand.u32 %v962, 2147483648
    %v1005 = vor.u32 1.1754944e-38, %v1004
    %v1006 = vsel %vm1003, %v1005, %v1001
    %v1007 = vmul.f32 1.0, %v1006
    %v1008 = vtanh.pop %v950
    %v1009 = vmul.f32 %v992, %v886
    %v1010 = vmul.f32 %v977, %v1008
    %v1011 = vadd.f32 %v1009, %v1010
    %v1012 = vtanh.pop %v1011
    %v1013 = vmul.f32 %v1007, %v1012
    %vm1014 = vcmp.gt.s32.totalorder %v560, 1
    %v1015 = vsel %vm1014, 1, 0
    %1016 = vset.pattern.permute.xlu0 0
    %1017 = vperm.xlu0 %1016, %v1015
    %v1018 = vpop.permute.xlu0 %1017
    %vm1019 = vcmp.eq.s32.totalorder %v1018, 1
    %v1020 = vsel %vm1019, %v1013, %v885
    %v1021 = vsel %vm1019, %v1011, %v886
    %s1022 = smul.u32 2, 4
    %s1023 = smul.addr %s1022, 8
    %s1024 = scalar_lea.vmem [#allocation3], %s1023
    %v1025 = vld [vmem:[%s1024] sm:$0xff]
    %v1026 = vld [vmem:[%s1024 + $0x8] sm:$0xff]
    %v1027 = vld [vmem:[%s1024 + $0x10] sm:$0xff]
    %v1028 = vld [vmem:[%s1024 + $0x18] sm:$0xff]
    %v1029 = vpack.c.bf16 %v1020, %v1020
    %1030 = vmatpush.bf16.msra.mxu0 %v724
    %1031 = vmatpush.bf16.msra.mxu0 %v720
    %1032 = vmatpush.bf16.msra.mxu0 %v716
    %1033 = vmatpush.bf16.msra.mxu0 %v712
    %1034 = vmatpush.bf16.msra.mxu0 %v708
    %1035 = vmatpush.bf16.msra.mxu0 %v704
    %1036 = vmatpush.bf16.msra.mxu0 %v700
    %1037 = vmatpush.bf16.msra.mxu0 %v696
    %1038 = vmatmul.bf16.gmra.mxu0 %v1029
    %v1039 = vpop.f32.mrf.mxu0
    %v1040 = vadd.f32 0.0, %v1039
    %v1041 = vpop.f32.mrf.mxu0
    %1042 = vdwg.mxu0
    %1043 = vmatpush.bf16.msra.mxu0 %v725
    %1044 = vmatpush.bf16.msra.mxu0 %v721
    %1045 = vmatpush.bf16.msra.mxu0 %v717
    %1046 = vmatpush.bf16.msra.mxu0 %v713
    %1047 = vmatpush.bf16.msra.mxu0 %v709
    %1048 = vmatpush.bf16.msra.mxu0 %v705
    %1049 = vmatpush.bf16.msra.mxu0 %v701
    %1050 = vmatpush.bf16.msra.mxu0 %v697
    %1051 = vmatmul.bf16.gmra.mxu0 %v1029
    %v1052 = vpop.f32.mrf.mxu0
    %v1053 = vadd.f32 0.0, %v1052
    %v1054 = vpop.f32.mrf.mxu0
    %1055 = vdwg.mxu0
    %1056 = vmatpush.bf16.msra.mxu0 %v726
    %1057 = vmatpush.bf16.msra.mxu0 %v722
    %1058 = vmatpush.bf16.msra.mxu0 %v718
    %1059 = vmatpush.bf16.msra.mxu0 %v714
    %1060 = vmatpush.bf16.msra.mxu0 %v710
    %1061 = vmatpush.bf16.msra.mxu0 %v706
    %1062 = vmatpush.bf16.msra.mxu0 %v702
    %1063 = vmatpush.bf16.msra.mxu0 %v698
    %1064 = vmatmul.bf16.gmra.mxu0 %v1029
    %v1065 = vpop.f32.mrf.mxu0
    %v1066 = vadd.f32 0.0, %v1065
    %v1067 = vpop.f32.mrf.mxu0
    %1068 = vdwg.mxu0
    %1069 = vmatpush.bf16.msra.mxu0 %v727
    %1070 = vmatpush.bf16.msra.mxu0 %v723
    %1071 = vmatpush.bf16.msra.mxu0 %v719
    %1072 = vmatpush.bf16.msra.mxu0 %v715
    %1073 = vmatpush.bf16.msra.mxu0 %v711
    %1074 = vmatpush.bf16.msra.mxu0 %v707
    %1075 = vmatpush.bf16.msra.mxu0 %v703
    %1076 = vmatpush.bf16.msra.mxu0 %v699
    %1077 = vmatmul.bf16.gmra.mxu0 %v1029
    %v1078 = vpop.f32.mrf.mxu0
    %v1079 = vadd.f32 0.0, %v1078
    %v1080 = vpop.f32.mrf.mxu0
    %1081 = vdwg.mxu0
    %v1082 = vadd.f32 %v1025, %v1040
    %v1083 = vadd.f32 %v1026, %v1053
    %v1084 = vadd.f32 %v1027, %v1066
    %v1085 = vadd.f32 %v1028, %v1079
    %v1086 = vxor.u32 %v1082, 2147483648
    %v1087 = vxor.u32 %v1083, 2147483648
    %v1088 = vxor.u32 %v1084, 2147483648
    %v1089 = vmul.f32 %v1086, 1.442695
    %v1090 = vpow.pop %v1089
    %v1091 = vmul.f32 %v1087, 1.442695
    %v1092 = vpow.pop %v1091
    %v1093 = vmul.f32 %v1088, 1.442695
    %v1094 = vpow.pop %v1093
    %v1095 = vadd.f32 %v1090, 1.0
    %v1096 = vadd.f32 %v1092, 1.0
    %v1097 = vadd.f32 %v1094, 1.0
    %v1098 = vrcp.pop %v1095
    %v1099 = vmul.f32 %v1095, %v1098
    %v1100 = vsub.f32 1.0, %v1099
    %v1101 = vmul.f32 %v1098, %v1100
    %v1102 = vadd.f32 %v1098, %v1101
    %vm1103 = vweird.f32 %v1095
    %vm1104 = vweird.f32 %v1098
    %vm1105 = vmor %vm1103, %vm1104
    %v1106 = vsel %vm1105, %v1098, %v1102
    %v1107 = vand.u32 2147483647, %v1095
    %vm1108 = vcmp.eq.f32.partialorder %v1107, 8.507059e+37
    %v1109 = vand.u32 %v1095, 2147483648
    %v1110 = vor.u32 1.1754944e-38, %v1109
    %v1111 = vsel %vm1108, %v1110, %v1106
    %v1112 = vmul.f32 1.0, %v1111
    %v1113 = vrcp.pop %v1096
    %v1114 = vmul.f32 %v1096, %v1113
    %v1115 = vsub.f32 1.0, %v1114
    %v1116 = vmul.f32 %v1113, %v1115
    %v1117 = vadd.f32 %v1113, %v1116
    %vm1118 = vweird.f32 %v1096
    %vm1119 = vweird.f32 %v1113
    %vm1120 = vmor %vm1118, %vm1119
    %v1121 = vsel %vm1120, %v1113, %v1117
    %v1122 = vand.u32 2147483647, %v1096
    %vm1123 = vcmp.eq.f32.partialorder %v1122, 8.507059e+37
    %v1124 = vand.u32 %v1096, 2147483648
    %v1125 = vor.u32 1.1754944e-38, %v1124
    %v1126 = vsel %vm1123, %v1125, %v1121
    %v1127 = vmul.f32 1.0, %v1126
    %v1128 = vrcp.pop %v1097
    %v1129 = vmul.f32 %v1097, %v1128
    %v1130 = vsub.f32 1.0, %v1129
    %v1131 = vmul.f32 %v1128, %v1130
    %v1132 = vadd.f32 %v1128, %v1131
    %vm1133 = vweird.f32 %v1097
    %vm1134 = vweird.f32 %v1128
    %vm1135 = vmor %vm1133, %vm1134
    %v1136 = vsel %vm1135, %v1128, %v1132
    %v1137 = vand.u32 2147483647, %v1097
    %vm1138 = vcmp.eq.f32.partialorder %v1137, 8.507059e+37
    %v1139 = vand.u32 %v1097, 2147483648
    %v1140 = vor.u32 1.1754944e-38, %v1139
    %v1141 = vsel %vm1138, %v1140, %v1136
    %v1142 = vmul.f32 1.0, %v1141
    %v1143 = vtanh.pop %v1085
    %v1144 = vmul.f32 %v1127, %v1021
    %v1145 = vmul.f32 %v1112, %v1143
    %v1146 = vadd.f32 %v1144, %v1145
    %v1147 = vtanh.pop %v1146
    %v1148 = vmul.f32 %v1142, %v1147
    %vm1149 = vcmp.gt.s32.totalorder %v560, 2
    %v1150 = vsel %vm1149, 1, 0
    %1151 = vset.pattern.permute.xlu0 0
    %1152 = vperm.xlu0 %1151, %v1150
    %v1153 = vpop.permute.xlu0 %1152
    %vm1154 = vcmp.eq.s32.totalorder %v1153, 1
    %v1155 = vsel %vm1154, %v1148, %v1020
    %v1156 = vsel %vm1154, %v1146, %v1021
    %s1157 = smul.u32 3, 4
    %s1158 = smul.addr %s1157, 8
    %s1159 = scalar_lea.vmem [#allocation3], %s1158
    %v1160 = vld [vmem:[%s1159] sm:$0xff]
    %v1161 = vld [vmem:[%s1159 + $0x8] sm:$0xff]
    %v1162 = vld [vmem:[%s1159 + $0x10] sm:$0xff]
    %v1163 = vld [vmem:[%s1159 + $0x18] sm:$0xff]
    %v1164 = vpack.c.bf16 %v1155, %v1155
    %1165 = vmatpush.bf16.msra.mxu0 %v724
    %1166 = vmatpush.bf16.msra.mxu0 %v720
    %1167 = vmatpush.bf16.msra.mxu0 %v716
    %1168 = vmatpush.bf16.msra.mxu0 %v712
    %1169 = vmatpush.bf16.msra.mxu0 %v708
    %1170 = vmatpush.bf16.msra.mxu0 %v704
    %1171 = vmatpush.bf16.msra.mxu0 %v700
    %1172 = vmatpush.bf16.msra.mxu0 %v696
    %1173 = vmatmul.bf16.gmra.mxu0 %v1164
    %v1174 = vpop.f32.mrf.mxu0
    %v1175 = vadd.f32 0.0, %v1174
    %v1176 = vpop.f32.mrf.mxu0
    %1177 = vdwg.mxu0
    %1178 = vmatpush.bf16.msra.mxu0 %v725
    %1179 = vmatpush.bf16.msra.mxu0 %v721
    %1180 = vmatpush.bf16.msra.mxu0 %v717
    %1181 = vmatpush.bf16.msra.mxu0 %v713
    %1182 = vmatpush.bf16.msra.mxu0 %v709
    %1183 = vmatpush.bf16.msra.mxu0 %v705
    %1184 = vmatpush.bf16.msra.mxu0 %v701
    %1185 = vmatpush.bf16.msra.mxu0 %v697
    %1186 = vmatmul.bf16.gmra.mxu0 %v1164
    %v1187 = vpop.f32.mrf.mxu0
    %v1188 = vadd.f32 0.0, %v1187
    %v1189 = vpop.f32.mrf.mxu0
    %1190 = vdwg.mxu0
    %1191 = vmatpush.bf16.msra.mxu0 %v726
    %1192 = vmatpush.bf16.msra.mxu0 %v722
    %1193 = vmatpush.bf16.msra.mxu0 %v718
    %1194 = vmatpush.bf16.msra.mxu0 %v714
    %1195 = vmatpush.bf16.msra.mxu0 %v710
    %1196 = vmatpush.bf16.msra.mxu0 %v706
    %1197 = vmatpush.bf16.msra.mxu0 %v702
    %1198 = vmatpush.bf16.msra.mxu0 %v698
    %1199 = vmatmul.bf16.gmra.mxu0 %v1164
    %v1200 = vpop.f32.mrf.mxu0
    %v1201 = vadd.f32 0.0, %v1200
    %v1202 = vpop.f32.mrf.mxu0
    %1203 = vdwg.mxu0
    %1204 = vmatpush.bf16.msra.mxu0 %v727
    %1205 = vmatpush.bf16.msra.mxu0 %v723
    %1206 = vmatpush.bf16.msra.mxu0 %v719
    %1207 = vmatpush.bf16.msra.mxu0 %v715
    %1208 = vmatpush.bf16.msra.mxu0 %v711
    %1209 = vmatpush.bf16.msra.mxu0 %v707
    %1210 = vmatpush.bf16.msra.mxu0 %v703
    %1211 = vmatpush.bf16.msra.mxu0 %v699
    %1212 = vmatmul.bf16.gmra.mxu0 %v1164
    %v1213 = vpop.f32.mrf.mxu0
    %v1214 = vadd.f32 0.0, %v1213
    %v1215 = vpop.f32.mrf.mxu0
    %1216 = vdwg.mxu0
    %v1217 = vadd.f32 %v1160, %v1175
    %v1218 = vadd.f32 %v1161, %v1188
    %v1219 = vadd.f32 %v1162, %v1201
    %v1220 = vadd.f32 %v1163, %v1214
    %v1221 = vxor.u32 %v1217, 2147483648
    %v1222 = vxor.u32 %v1218, 2147483648
    %v1223 = vxor.u32 %v1219, 2147483648
    %v1224 = vmul.f32 %v1221, 1.442695
    %v1225 = vpow.pop %v1224
    %v1226 = vmul.f32 %v1222, 1.442695
    %v1227 = vpow.pop %v1226
    %v1228 = vmul.f32 %v1223, 1.442695
    %v1229 = vpow.pop %v1228
    %v1230 = vadd.f32 %v1225, 1.0
    %v1231 = vadd.f32 %v1227, 1.0
    %v1232 = vadd.f32 %v1229, 1.0
    %v1233 = vrcp.pop %v1230
    %v1234 = vmul.f32 %v1230, %v1233
    %v1235 = vsub.f32 1.0, %v1234
    %v1236 = vmul.f32 %v1233, %v1235
    %v1237 = vadd.f32 %v1233, %v1236
    %vm1238 = vweird.f32 %v1230
    %vm1239 = vweird.f32 %v1233
    %vm1240 = vmor %vm1238, %vm1239
    %v1241 = vsel %vm1240, %v1233, %v1237
    %v1242 = vand.u32 2147483647, %v1230
    %vm1243 = vcmp.eq.f32.partialorder %v1242, 8.507059e+37
    %v1244 = vand.u32 %v1230, 2147483648
    %v1245 = vor.u32 1.1754944e-38, %v1244
    %v1246 = vsel %vm1243, %v1245, %v1241
    %v1247 = vmul.f32 1.0, %v1246
    %v1248 = vrcp.pop %v1231
    %v1249 = vmul.f32 %v1231, %v1248
    %v1250 = vsub.f32 1.0, %v1249
    %v1251 = vmul.f32 %v1248, %v1250
    %v1252 = vadd.f32 %v1248, %v1251
    %vm1253 = vweird.f32 %v1231
    %vm1254 = vweird.f32 %v1248
    %vm1255 = vmor %vm1253, %vm1254
    %v1256 = vsel %vm1255, %v1248, %v1252
    %v1257 = vand.u32 2147483647, %v1231
    %vm1258 = vcmp.eq.f32.partialorder %v1257, 8.507059e+37
    %v1259 = vand.u32 %v1231, 2147483648
    %v1260 = vor.u32 1.1754944e-38, %v1259
    %v1261 = vsel %vm1258, %v1260, %v1256
    %v1262 = vmul.f32 1.0, %v1261
    %v1263 = vrcp.pop %v1232
    %v1264 = vmul.f32 %v1232, %v1263
    %v1265 = vsub.f32 1.0, %v1264
    %v1266 = vmul.f32 %v1263, %v1265
    %v1267 = vadd.f32 %v1263, %v1266
    %vm1268 = vweird.f32 %v1232
    %vm1269 = vweird.f32 %v1263
    %vm1270 = vmor %vm1268, %vm1269
    %v1271 = vsel %vm1270, %v1263, %v1267
    %v1272 = vand.u32 2147483647, %v1232
    %vm1273 = vcmp.eq.f32.partialorder %v1272, 8.507059e+37
    %v1274 = vand.u32 %v1232, 2147483648
    %v1275 = vor.u32 1.1754944e-38, %v1274
    %v1276 = vsel %vm1273, %v1275, %v1271
    %v1277 = vmul.f32 1.0, %v1276
    %v1278 = vtanh.pop %v1220
    %v1279 = vmul.f32 %v1262, %v1156
    %v1280 = vmul.f32 %v1247, %v1278
    %v1281 = vadd.f32 %v1279, %v1280
    %v1282 = vtanh.pop %v1281
    %v1283 = vmul.f32 %v1277, %v1282
    %vm1284 = vcmp.gt.s32.totalorder %v560, 3
    %v1285 = vsel %vm1284, 1, 0
    %1286 = vset.pattern.permute.xlu0 0
    %1287 = vperm.xlu0 %1286, %v1285
    %v1288 = vpop.permute.xlu0 %1287
    %vm1289 = vcmp.eq.s32.totalorder %v1288, 1
    %v1290 = vsel %vm1289, %v1283, %v1155
    %v1291 = vsel %vm1289, %v1281, %v1156
    %s1292 = smul.u32 4, 4
    %s1293 = smul.addr %s1292, 8
    %s1294 = scalar_lea.vmem [#allocation3], %s1293
    %v1295 = vld [vmem:[%s1294] sm:$0xff]
    %v1296 = vld [vmem:[%s1294 + $0x8] sm:$0xff]
    %v1297 = vld [vmem:[%s1294 + $0x10] sm:$0xff]
    %v1298 = vld [vmem:[%s1294 + $0x18] sm:$0xff]
    %v1299 = vpack.c.bf16 %v1290, %v1290
    %1300 = vmatpush.bf16.msra.mxu0 %v724
    %1301 = vmatpush.bf16.msra.mxu0 %v720
    %1302 = vmatpush.bf16.msra.mxu0 %v716
    %1303 = vmatpush.bf16.msra.mxu0 %v712
    %1304 = vmatpush.bf16.msra.mxu0 %v708
    %1305 = vmatpush.bf16.msra.mxu0 %v704
    %1306 = vmatpush.bf16.msra.mxu0 %v700
    %1307 = vmatpush.bf16.msra.mxu0 %v696
    %1308 = vmatmul.bf16.gmra.mxu0 %v1299
    %v1309 = vpop.f32.mrf.mxu0
    %v1310 = vadd.f32 0.0, %v1309
    %v1311 = vpop.f32.mrf.mxu0
    %1312 = vdwg.mxu0
    %1313 = vmatpush.bf16.msra.mxu0 %v725
    %1314 = vmatpush.bf16.msra.mxu0 %v721
    %1315 = vmatpush.bf16.msra.mxu0 %v717
    %1316 = vmatpush.bf16.msra.mxu0 %v713
    %1317 = vmatpush.bf16.msra.mxu0 %v709
    %1318 = vmatpush.bf16.msra.mxu0 %v705
    %1319 = vmatpush.bf16.msra.mxu0 %v701
    %1320 = vmatpush.bf16.msra.mxu0 %v697
    %1321 = vmatmul.bf16.gmra.mxu0 %v1299
    %v1322 = vpop.f32.mrf.mxu0
    %v1323 = vadd.f32 0.0, %v1322
    %v1324 = vpop.f32.mrf.mxu0
    %1325 = vdwg.mxu0
    %1326 = vmatpush.bf16.msra.mxu0 %v726
    %1327 = vmatpush.bf16.msra.mxu0 %v722
    %1328 = vmatpush.bf16.msra.mxu0 %v718
    %1329 = vmatpush.bf16.msra.mxu0 %v714
    %1330 = vmatpush.bf16.msra.mxu0 %v710
    %1331 = vmatpush.bf16.msra.mxu0 %v706
    %1332 = vmatpush.bf16.msra.mxu0 %v702
    %1333 = vmatpush.bf16.msra.mxu0 %v698
    %1334 = vmatmul.bf16.gmra.mxu0 %v1299
    %v1335 = vpop.f32.mrf.mxu0
    %v1336 = vadd.f32 0.0, %v1335
    %v1337 = vpop.f32.mrf.mxu0
    %1338 = vdwg.mxu0
    %1339 = vmatpush.bf16.msra.mxu0 %v727
    %1340 = vmatpush.bf16.msra.mxu0 %v723
    %1341 = vmatpush.bf16.msra.mxu0 %v719
    %1342 = vmatpush.bf16.msra.mxu0 %v715
    %1343 = vmatpush.bf16.msra.mxu0 %v711
    %1344 = vmatpush.bf16.msra.mxu0 %v707
    %1345 = vmatpush.bf16.msra.mxu0 %v703
    %1346 = vmatpush.bf16.msra.mxu0 %v699
    %1347 = vmatmul.bf16.gmra.mxu0 %v1299
    %v1348 = vpop.f32.mrf.mxu0
    %v1349 = vadd.f32 0.0, %v1348
    %v1350 = vpop.f32.mrf.mxu0
    %1351 = vdwg.mxu0
    %v1352 = vadd.f32 %v1295, %v1310
    %v1353 = vadd.f32 %v1296, %v1323
    %v1354 = vadd.f32 %v1297, %v1336
    %v1355 = vadd.f32 %v1298, %v1349
    %v1356 = vxor.u32 %v1352, 2147483648
    %v1357 = vxor.u32 %v1353, 2147483648
    %v1358 = vxor.u32 %v1354, 2147483648
    %v1359 = vmul.f32 %v1356, 1.442695
    %v1360 = vpow.pop %v1359
    %v1361 = vmul.f32 %v1357, 1.442695
    %v1362 = vpow.pop %v1361
    %v1363 = vmul.f32 %v1358, 1.442695
    %v1364 = vpow.pop %v1363
    %v1365 = vadd.f32 %v1360, 1.0
    %v1366 = vadd.f32 %v1362, 1.0
    %v1367 = vadd.f32 %v1364, 1.0
    %v1368 = vrcp.pop %v1365
    %v1369 = vmul.f32 %v1365, %v1368
    %v1370 = vsub.f32 1.0, %v1369
    %v1371 = vmul.f32 %v1368, %v1370
    %v1372 = vadd.f32 %v1368, %v1371
    %vm1373 = vweird.f32 %v1365
    %vm1374 = vweird.f32 %v1368
    %vm1375 = vmor %vm1373, %vm1374
    %v1376 = vsel %vm1375, %v1368, %v1372
    %v1377 = vand.u32 2147483647, %v1365
    %vm1378 = vcmp.eq.f32.partialorder %v1377, 8.507059e+37
    %v1379 = vand.u32 %v1365, 2147483648
    %v1380 = vor.u32 1.1754944e-38, %v1379
    %v1381 = vsel %vm1378, %v1380, %v1376
    %v1382 = vmul.f32 1.0, %v1381
    %v1383 = vrcp.pop %v1366
    %v1384 = vmul.f32 %v1366, %v1383
    %v1385 = vsub.f32 1.0, %v1384
    %v1386 = vmul.f32 %v1383, %v1385
    %v1387 = vadd.f32 %v1383, %v1386
    %vm1388 = vweird.f32 %v1366
    %vm1389 = vweird.f32 %v1383
    %vm1390 = vmor %vm1388, %vm1389
    %v1391 = vsel %vm1390, %v1383, %v1387
    %v1392 = vand.u32 2147483647, %v1366
    %vm1393 = vcmp.eq.f32.partialorder %v1392, 8.507059e+37
    %v1394 = vand.u32 %v1366, 2147483648
    %v1395 = vor.u32 1.1754944e-38, %v1394
    %v1396 = vsel %vm1393, %v1395, %v1391
    %v1397 = vmul.f32 1.0, %v1396
    %v1398 = vrcp.pop %v1367
    %v1399 = vmul.f32 %v1367, %v1398
    %v1400 = vsub.f32 1.0, %v1399
    %v1401 = vmul.f32 %v1398, %v1400
    %v1402 = vadd.f32 %v1398, %v1401
    %vm1403 = vweird.f32 %v1367
    %vm1404 = vweird.f32 %v1398
    %vm1405 = vmor %vm1403, %vm1404
    %v1406 = vsel %vm1405, %v1398, %v1402
    %v1407 = vand.u32 2147483647, %v1367
    %vm1408 = vcmp.eq.f32.partialorder %v1407, 8.507059e+37
    %v1409 = vand.u32 %v1367, 2147483648
    %v1410 = vor.u32 1.1754944e-38, %v1409
    %v1411 = vsel %vm1408, %v1410, %v1406
    %v1412 = vmul.f32 1.0, %v1411
    %v1413 = vtanh.pop %v1355
    %v1414 = vmul.f32 %v1397, %v1291
    %v1415 = vmul.f32 %v1382, %v1413
    %v1416 = vadd.f32 %v1414, %v1415
    %v1417 = vtanh.pop %v1416
    %v1418 = vmul.f32 %v1412, %v1417
    %vm1419 = vcmp.gt.s32.totalorder %v560, 4
    %v1420 = vsel %vm1419, 1, 0
    %1421 = vset.pattern.permute.xlu0 0
    %1422 = vperm.xlu0 %1421, %v1420
    %v1423 = vpop.permute.xlu0 %1422
    %vm1424 = vcmp.eq.s32.totalorder %v1423, 1
    %v1425 = vsel %vm1424, %v1418, %v1290
    %v1426 = vsel %vm1424, %v1416, %v1291
    %s1427 = smul.u32 5, 4
    %s1428 = smul.addr %s1427, 8
    %s1429 = scalar_lea.vmem [#allocation3], %s1428
    %v1430 = vld [vmem:[%s1429] sm:$0xff]
    %v1431 = vld [vmem:[%s1429 + $0x8] sm:$0xff]
    %v1432 = vld [vmem:[%s1429 + $0x10] sm:$0xff]
    %v1433 = vld [vmem:[%s1429 + $0x18] sm:$0xff]
    %v1434 = vpack.c.bf16 %v1425, %v1425
    %1435 = vmatpush.bf16.msra.mxu0 %v724
    %1436 = vmatpush.bf16.msra.mxu0 %v720
    %1437 = vmatpush.bf16.msra.mxu0 %v716
    %1438 = vmatpush.bf16.msra.mxu0 %v712
    %1439 = vmatpush.bf16.msra.mxu0 %v708
    %1440 = vmatpush.bf16.msra.mxu0 %v704
    %1441 = vmatpush.bf16.msra.mxu0 %v700
    %1442 = vmatpush.bf16.msra.mxu0 %v696
    %1443 = vmatmul.bf16.gmra.mxu0 %v1434
    %v1444 = vpop.f32.mrf.mxu0
    %v1445 = vadd.f32 0.0, %v1444
    %v1446 = vpop.f32.mrf.mxu0
    %1447 = vdwg.mxu0
    %1448 = vmatpush.bf16.msra.mxu0 %v725
    %1449 = vmatpush.bf16.msra.mxu0 %v721
    %1450 = vmatpush.bf16.msra.mxu0 %v717
    %1451 = vmatpush.bf16.msra.mxu0 %v713
    %1452 = vmatpush.bf16.msra.mxu0 %v709
    %1453 = vmatpush.bf16.msra.mxu0 %v705
    %1454 = vmatpush.bf16.msra.mxu0 %v701
    %1455 = vmatpush.bf16.msra.mxu0 %v697
    %1456 = vmatmul.bf16.gmra.mxu0 %v1434
    %v1457 = vpop.f32.mrf.mxu0
    %v1458 = vadd.f32 0.0, %v1457
    %v1459 = vpop.f32.mrf.mxu0
    %1460 = vdwg.mxu0
    %1461 = vmatpush.bf16.msra.mxu0 %v726
    %1462 = vmatpush.bf16.msra.mxu0 %v722
    %1463 = vmatpush.bf16.msra.mxu0 %v718
    %1464 = vmatpush.bf16.msra.mxu0 %v714
    %1465 = vmatpush.bf16.msra.mxu0 %v710
    %1466 = vmatpush.bf16.msra.mxu0 %v706
    %1467 = vmatpush.bf16.msra.mxu0 %v702
    %1468 = vmatpush.bf16.msra.mxu0 %v698
    %1469 = vmatmul.bf16.gmra.mxu0 %v1434
    %v1470 = vpop.f32.mrf.mxu0
    %v1471 = vadd.f32 0.0, %v1470
    %v1472 = vpop.f32.mrf.mxu0
    %1473 = vdwg.mxu0
    %1474 = vmatpush.bf16.msra.mxu0 %v727
    %1475 = vmatpush.bf16.msra.mxu0 %v723
    %1476 = vmatpush.bf16.msra.mxu0 %v719
    %1477 = vmatpush.bf16.msra.mxu0 %v715
    %1478 = vmatpush.bf16.msra.mxu0 %v711
    %1479 = vmatpush.bf16.msra.mxu0 %v707
    %1480 = vmatpush.bf16.msra.mxu0 %v703
    %1481 = vmatpush.bf16.msra.mxu0 %v699
    %1482 = vmatmul.bf16.gmra.mxu0 %v1434
    %v1483 = vpop.f32.mrf.mxu0
    %v1484 = vadd.f32 0.0, %v1483
    %v1485 = vpop.f32.mrf.mxu0
    %1486 = vdwg.mxu0
    %v1487 = vadd.f32 %v1430, %v1445
    %v1488 = vadd.f32 %v1431, %v1458
    %v1489 = vadd.f32 %v1432, %v1471
    %v1490 = vadd.f32 %v1433, %v1484
    %v1491 = vxor.u32 %v1487, 2147483648
    %v1492 = vxor.u32 %v1488, 2147483648
    %v1493 = vxor.u32 %v1489, 2147483648
    %v1494 = vmul.f32 %v1491, 1.442695
    %v1495 = vpow.pop %v1494
    %v1496 = vmul.f32 %v1492, 1.442695
    %v1497 = vpow.pop %v1496
    %v1498 = vmul.f32 %v1493, 1.442695
    %v1499 = vpow.pop %v1498
    %v1500 = vadd.f32 %v1495, 1.0
    %v1501 = vadd.f32 %v1497, 1.0
    %v1502 = vadd.f32 %v1499, 1.0
    %v1503 = vrcp.pop %v1500
    %v1504 = vmul.f32 %v1500, %v1503
    %v1505 = vsub.f32 1.0, %v1504
    %v1506 = vmul.f32 %v1503, %v1505
    %v1507 = vadd.f32 %v1503, %v1506
    %vm1508 = vweird.f32 %v1500
    %vm1509 = vweird.f32 %v1503
    %vm1510 = vmor %vm1508, %vm1509
    %v1511 = vsel %vm1510, %v1503, %v1507
    %v1512 = vand.u32 2147483647, %v1500
    %vm1513 = vcmp.eq.f32.partialorder %v1512, 8.507059e+37
    %v1514 = vand.u32 %v1500, 2147483648
    %v1515 = vor.u32 1.1754944e-38, %v1514
    %v1516 = vsel %vm1513, %v1515, %v1511
    %v1517 = vmul.f32 1.0, %v1516
    %v1518 = vrcp.pop %v1501
    %v1519 = vmul.f32 %v1501, %v1518
    %v1520 = vsub.f32 1.0, %v1519
    %v1521 = vmul.f32 %v1518, %v1520
    %v1522 = vadd.f32 %v1518, %v1521
    %vm1523 = vweird.f32 %v1501
    %vm1524 = vweird.f32 %v1518
    %vm1525 = vmor %vm1523, %vm1524
    %v1526 = vsel %vm1525, %v1518, %v1522
    %v1527 = vand.u32 2147483647, %v1501
    %vm1528 = vcmp.eq.f32.partialorder %v1527, 8.507059e+37
    %v1529 = vand.u32 %v1501, 2147483648
    %v1530 = vor.u32 1.1754944e-38, %v1529
    %v1531 = vsel %vm1528, %v1530, %v1526
    %v1532 = vmul.f32 1.0, %v1531
    %v1533 = vrcp.pop %v1502
    %v1534 = vmul.f32 %v1502, %v1533
    %v1535 = vsub.f32 1.0, %v1534
    %v1536 = vmul.f32 %v1533, %v1535
    %v1537 = vadd.f32 %v1533, %v1536
    %vm1538 = vweird.f32 %v1502
    %vm1539 = vweird.f32 %v1533
    %vm1540 = vmor %vm1538, %vm1539
    %v1541 = vsel %vm1540, %v1533, %v1537
    %v1542 = vand.u32 2147483647, %v1502
    %vm1543 = vcmp.eq.f32.partialorder %v1542, 8.507059e+37
    %v1544 = vand.u32 %v1502, 2147483648
    %v1545 = vor.u32 1.1754944e-38, %v1544
    %v1546 = vsel %vm1543, %v1545, %v1541
    %v1547 = vmul.f32 1.0, %v1546
    %v1548 = vtanh.pop %v1490
    %v1549 = vmul.f32 %v1532, %v1426
    %v1550 = vmul.f32 %v1517, %v1548
    %v1551 = vadd.f32 %v1549, %v1550
    %v1552 = vtanh.pop %v1551
    %v1553 = vmul.f32 %v1547, %v1552
    %vm1554 = vcmp.gt.s32.totalorder %v560, 5
    %v1555 = vsel %vm1554, 1, 0
    %1556 = vset.pattern.permute.xlu0 0
    %1557 = vperm.xlu0 %1556, %v1555
    %v1558 = vpop.permute.xlu0 %1557
    %vm1559 = vcmp.eq.s32.totalorder %v1558, 1
    %v1560 = vsel %vm1559, %v1553, %v1425
    %v1561 = vsel %vm1559, %v1551, %v1426
    %s1562 = smul.u32 6, 4
    %s1563 = smul.addr %s1562, 8
    %s1564 = scalar_lea.vmem [#allocation3], %s1563
    %v1565 = vld [vmem:[%s1564] sm:$0xff]
    %v1566 = vld [vmem:[%s1564 + $0x8] sm:$0xff]
    %v1567 = vld [vmem:[%s1564 + $0x10] sm:$0xff]
    %v1568 = vld [vmem:[%s1564 + $0x18] sm:$0xff]
    %v1569 = vpack.c.bf16 %v1560, %v1560
    %1570 = vmatpush.bf16.msra.mxu0 %v724
    %1571 = vmatpush.bf16.msra.mxu0 %v720
    %1572 = vmatpush.bf16.msra.mxu0 %v716
    %1573 = vmatpush.bf16.msra.mxu0 %v712
    %1574 = vmatpush.bf16.msra.mxu0 %v708
    %1575 = vmatpush.bf16.msra.mxu0 %v704
    %1576 = vmatpush.bf16.msra.mxu0 %v700
    %1577 = vmatpush.bf16.msra.mxu0 %v696
    %1578 = vmatmul.bf16.gmra.mxu0 %v1569
    %v1579 = vpop.f32.mrf.mxu0
    %v1580 = vadd.f32 0.0, %v1579
    %v1581 = vpop.f32.mrf.mxu0
    %1582 = vdwg.mxu0
    %1583 = vmatpush.bf16.msra.mxu0 %v725
    %1584 = vmatpush.bf16.msra.mxu0 %v721
    %1585 = vmatpush.bf16.msra.mxu0 %v717
    %1586 = vmatpush.bf16.msra.mxu0 %v713
    %1587 = vmatpush.bf16.msra.mxu0 %v709
    %1588 = vmatpush.bf16.msra.mxu0 %v705
    %1589 = vmatpush.bf16.msra.mxu0 %v701
    %1590 = vmatpush.bf16.msra.mxu0 %v697
    %1591 = vmatmul.bf16.gmra.mxu0 %v1569
    %v1592 = vpop.f32.mrf.mxu0
    %v1593 = vadd.f32 0.0, %v1592
    %v1594 = vpop.f32.mrf.mxu0
    %1595 = vdwg.mxu0
    %1596 = vmatpush.bf16.msra.mxu0 %v726
    %1597 = vmatpush.bf16.msra.mxu0 %v722
    %1598 = vmatpush.bf16.msra.mxu0 %v718
    %1599 = vmatpush.bf16.msra.mxu0 %v714
    %1600 = vmatpush.bf16.msra.mxu0 %v710
    %1601 = vmatpush.bf16.msra.mxu0 %v706
    %1602 = vmatpush.bf16.msra.mxu0 %v702
    %1603 = vmatpush.bf16.msra.mxu0 %v698
    %1604 = vmatmul.bf16.gmra.mxu0 %v1569
    %v1605 = vpop.f32.mrf.mxu0
    %v1606 = vadd.f32 0.0, %v1605
    %v1607 = vpop.f32.mrf.mxu0
    %1608 = vdwg.mxu0
    %1609 = vmatpush.bf16.msra.mxu0 %v727
    %1610 = vmatpush.bf16.msra.mxu0 %v723
    %1611 = vmatpush.bf16.msra.mxu0 %v719
    %1612 = vmatpush.bf16.msra.mxu0 %v715
    %1613 = vmatpush.bf16.msra.mxu0 %v711
    %1614 = vmatpush.bf16.msra.mxu0 %v707
    %1615 = vmatpush.bf16.msra.mxu0 %v703
    %1616 = vmatpush.bf16.msra.mxu0 %v699
    %1617 = vmatmul.bf16.gmra.mxu0 %v1569
    %v1618 = vpop.f32.mrf.mxu0
    %v1619 = vadd.f32 0.0, %v1618
    %v1620 = vpop.f32.mrf.mxu0
    %1621 = vdwg.mxu0
    %v1622 = vadd.f32 %v1565, %v1580
    %v1623 = vadd.f32 %v1566, %v1593
    %v1624 = vadd.f32 %v1567, %v1606
    %v1625 = vadd.f32 %v1568, %v1619
    %v1626 = vxor.u32 %v1622, 2147483648
    %v1627 = vxor.u32 %v1623, 2147483648
    %v1628 = vxor.u32 %v1624, 2147483648
    %v1629 = vmul.f32 %v1626, 1.442695
    %v1630 = vpow.pop %v1629
    %v1631 = vmul.f32 %v1627, 1.442695
    %v1632 = vpow.pop %v1631
    %v1633 = vmul.f32 %v1628, 1.442695
    %v1634 = vpow.pop %v1633
    %v1635 = vadd.f32 %v1630, 1.0
    %v1636 = vadd.f32 %v1632, 1.0
    %v1637 = vadd.f32 %v1634, 1.0
    %v1638 = vrcp.pop %v1635
    %v1639 = vmul.f32 %v1635, %v1638
    %v1640 = vsub.f32 1.0, %v1639
    %v1641 = vmul.f32 %v1638, %v1640
    %v1642 = vadd.f32 %v1638, %v1641
    %vm1643 = vweird.f32 %v1635
    %vm1644 = vweird.f32 %v1638
    %vm1645 = vmor %vm1643, %vm1644
    %v1646 = vsel %vm1645, %v1638, %v1642
    %v1647 = vand.u32 2147483647, %v1635
    %vm1648 = vcmp.eq.f32.partialorder %v1647, 8.507059e+37
    %v1649 = vand.u32 %v1635, 2147483648
    %v1650 = vor.u32 1.1754944e-38, %v1649
    %v1651 = vsel %vm1648, %v1650, %v1646
    %v1652 = vmul.f32 1.0, %v1651
    %v1653 = vrcp.pop %v1636
    %v1654 = vmul.f32 %v1636, %v1653
    %v1655 = vsub.f32 1.0, %v1654
    %v1656 = vmul.f32 %v1653, %v1655
    %v1657 = vadd.f32 %v1653, %v1656
    %vm1658 = vweird.f32 %v1636
    %vm1659 = vweird.f32 %v1653
    %vm1660 = vmor %vm1658, %vm1659
    %v1661 = vsel %vm1660, %v1653, %v1657
    %v1662 = vand.u32 2147483647, %v1636
    %vm1663 = vcmp.eq.f32.partialorder %v1662, 8.507059e+37
    %v1664 = vand.u32 %v1636, 2147483648
    %v1665 = vor.u32 1.1754944e-38, %v1664
    %v1666 = vsel %vm1663, %v1665, %v1661
    %v1667 = vmul.f32 1.0, %v1666
    %v1668 = vrcp.pop %v1637
    %v1669 = vmul.f32 %v1637, %v1668
    %v1670 = vsub.f32 1.0, %v1669
    %v1671 = vmul.f32 %v1668, %v1670
    %v1672 = vadd.f32 %v1668, %v1671
    %vm1673 = vweird.f32 %v1637
    %vm1674 = vweird.f32 %v1668
    %vm1675 = vmor %vm1673, %vm1674
    %v1676 = vsel %vm1675, %v1668, %v1672
    %v1677 = vand.u32 2147483647, %v1637
    %vm1678 = vcmp.eq.f32.partialorder %v1677, 8.507059e+37
    %v1679 = vand.u32 %v1637, 2147483648
    %v1680 = vor.u32 1.1754944e-38, %v1679
    %v1681 = vsel %vm1678, %v1680, %v1676
    %v1682 = vmul.f32 1.0, %v1681
    %v1683 = vtanh.pop %v1625
    %v1684 = vmul.f32 %v1667, %v1561
    %v1685 = vmul.f32 %v1652, %v1683
    %v1686 = vadd.f32 %v1684, %v1685
    %v1687 = vtanh.pop %v1686
    %v1688 = vmul.f32 %v1682, %v1687
    %vm1689 = vcmp.gt.s32.totalorder %v560, 6
    %v1690 = vsel %vm1689, 1, 0
    %1691 = vset.pattern.permute.xlu0 0
    %1692 = vperm.xlu0 %1691, %v1690
    %v1693 = vpop.permute.xlu0 %1692
    %vm1694 = vcmp.eq.s32.totalorder %v1693, 1
    %v1695 = vsel %vm1694, %v1688, %v1560
    %v1696 = vsel %vm1694, %v1686, %v1561
    %s1697 = smul.u32 7, 4
    %s1698 = smul.addr %s1697, 8
    %s1699 = scalar_lea.vmem [#allocation3], %s1698
    %v1700 = vld [vmem:[%s1699] sm:$0xff]
    %v1701 = vld [vmem:[%s1699 + $0x8] sm:$0xff]
    %v1702 = vld [vmem:[%s1699 + $0x10] sm:$0xff]
    %v1703 = vld [vmem:[%s1699 + $0x18] sm:$0xff]
    %v1704 = vpack.c.bf16 %v1695, %v1695
    %1705 = vmatpush.bf16.msra.mxu0 %v724
    %1706 = vmatpush.bf16.msra.mxu0 %v720
    %1707 = vmatpush.bf16.msra.mxu0 %v716
    %1708 = vmatpush.bf16.msra.mxu0 %v712
    %1709 = vmatpush.bf16.msra.mxu0 %v708
    %1710 = vmatpush.bf16.msra.mxu0 %v704
    %1711 = vmatpush.bf16.msra.mxu0 %v700
    %1712 = vmatpush.bf16.msra.mxu0 %v696
    %1713 = vmatmul.bf16.gmra.mxu0 %v1704
    %v1714 = vpop.f32.mrf.mxu0
    %v1715 = vadd.f32 0.0, %v1714
    %v1716 = vpop.f32.mrf.mxu0
    %1717 = vdwg.mxu0
    %1718 = vmatpush.bf16.msra.mxu0 %v725
    %1719 = vmatpush.bf16.msra.mxu0 %v721
    %1720 = vmatpush.bf16.msra.mxu0 %v717
    %1721 = vmatpush.bf16.msra.mxu0 %v713
    %1722 = vmatpush.bf16.msra.mxu0 %v709
    %1723 = vmatpush.bf16.msra.mxu0 %v705
    %1724 = vmatpush.bf16.msra.mxu0 %v701
    %1725 = vmatpush.bf16.msra.mxu0 %v697
    %1726 = vmatmul.bf16.gmra.mxu0 %v1704
    %v1727 = vpop.f32.mrf.mxu0
    %v1728 = vadd.f32 0.0, %v1727
    %v1729 = vpop.f32.mrf.mxu0
    %1730 = vdwg.mxu0
    %1731 = vmatpush.bf16.msra.mxu0 %v726
    %1732 = vmatpush.bf16.msra.mxu0 %v722
    %1733 = vmatpush.bf16.msra.mxu0 %v718
    %1734 = vmatpush.bf16.msra.mxu0 %v714
    %1735 = vmatpush.bf16.msra.mxu0 %v710
    %1736 = vmatpush.bf16.msra.mxu0 %v706
    %1737 = vmatpush.bf16.msra.mxu0 %v702
    %1738 = vmatpush.bf16.msra.mxu0 %v698
    %1739 = vmatmul.bf16.gmra.mxu0 %v1704
    %v1740 = vpop.f32.mrf.mxu0
    %v1741 = vadd.f32 0.0, %v1740
    %v1742 = vpop.f32.mrf.mxu0
    %1743 = vdwg.mxu0
    %1744 = vmatpush.bf16.msra.mxu0 %v727
    %1745 = vmatpush.bf16.msra.mxu0 %v723
    %1746 = vmatpush.bf16.msra.mxu0 %v719
    %1747 = vmatpush.bf16.msra.mxu0 %v715
    %1748 = vmatpush.bf16.msra.mxu0 %v711
    %1749 = vmatpush.bf16.msra.mxu0 %v707
    %1750 = vmatpush.bf16.msra.mxu0 %v703
    %1751 = vmatpush.bf16.msra.mxu0 %v699
    %1752 = vmatmul.bf16.gmra.mxu0 %v1704
    %v1753 = vpop.f32.mrf.mxu0
    %v1754 = vadd.f32 0.0, %v1753
    %v1755 = vpop.f32.mrf.mxu0
    %1756 = vdwg.mxu0
    %v1757 = vadd.f32 %v1700, %v1715
    %v1758 = vadd.f32 %v1701, %v1728
    %v1759 = vadd.f32 %v1702, %v1741
    %v1760 = vadd.f32 %v1703, %v1754
    %v1761 = vxor.u32 %v1757, 2147483648
    %v1762 = vxor.u32 %v1758, 2147483648
    %v1763 = vxor.u32 %v1759, 2147483648
    %v1764 = vmul.f32 %v1761, 1.442695
    %v1765 = vpow.pop %v1764
    %v1766 = vmul.f32 %v1762, 1.442695
    %v1767 = vpow.pop %v1766
    %v1768 = vmul.f32 %v1763, 1.442695
    %v1769 = vpow.pop %v1768
    %v1770 = vadd.f32 %v1765, 1.0
    %v1771 = vadd.f32 %v1767, 1.0
    %v1772 = vadd.f32 %v1769, 1.0
    %v1773 = vrcp.pop %v1770
    %v1774 = vmul.f32 %v1770, %v1773
    %v1775 = vsub.f32 1.0, %v1774
    %v1776 = vmul.f32 %v1773, %v1775
    %v1777 = vadd.f32 %v1773, %v1776
    %vm1778 = vweird.f32 %v1770
    %vm1779 = vweird.f32 %v1773
    %vm1780 = vmor %vm1778, %vm1779
    %v1781 = vsel %vm1780, %v1773, %v1777
    %v1782 = vand.u32 2147483647, %v1770
    %vm1783 = vcmp.eq.f32.partialorder %v1782, 8.507059e+37
    %v1784 = vand.u32 %v1770, 2147483648
    %v1785 = vor.u32 1.1754944e-38, %v1784
    %v1786 = vsel %vm1783, %v1785, %v1781
    %v1787 = vmul.f32 1.0, %v1786
    %v1788 = vrcp.pop %v1771
    %v1789 = vmul.f32 %v1771, %v1788
    %v1790 = vsub.f32 1.0, %v1789
    %v1791 = vmul.f32 %v1788, %v1790
    %v1792 = vadd.f32 %v1788, %v1791
    %vm1793 = vweird.f32 %v1771
    %vm1794 = vweird.f32 %v1788
    %vm1795 = vmor %vm1793, %vm1794
    %v1796 = vsel %vm1795, %v1788, %v1792
    %v1797 = vand.u32 2147483647, %v1771
    %vm1798 = vcmp.eq.f32.partialorder %v1797, 8.507059e+37
    %v1799 = vand.u32 %v1771, 2147483648
    %v1800 = vor.u32 1.1754944e-38, %v1799
    %v1801 = vsel %vm1798, %v1800, %v1796
    %v1802 = vmul.f32 1.0, %v1801
    %v1803 = vrcp.pop %v1772
    %v1804 = vmul.f32 %v1772, %v1803
    %v1805 = vsub.f32 1.0, %v1804
    %v1806 = vmul.f32 %v1803, %v1805
    %v1807 = vadd.f32 %v1803, %v1806
    %vm1808 = vweird.f32 %v1772
    %vm1809 = vweird.f32 %v1803
    %vm1810 = vmor %vm1808, %vm1809
    %v1811 = vsel %vm1810, %v1803, %v1807
    %v1812 = vand.u32 2147483647, %v1772
    %vm1813 = vcmp.eq.f32.partialorder %v1812, 8.507059e+37
    %v1814 = vand.u32 %v1772, 2147483648
    %v1815 = vor.u32 1.1754944e-38, %v1814
    %v1816 = vsel %vm1813, %v1815, %v1811
    %v1817 = vmul.f32 1.0, %v1816
    %v1818 = vtanh.pop %v1760
    %v1819 = vmul.f32 %v1802, %v1696
    %v1820 = vmul.f32 %v1787, %v1818
    %v1821 = vadd.f32 %v1819, %v1820
    %v1822 = vtanh.pop %v1821
    %v1823 = vmul.f32 %v1817, %v1822
    %vm1824 = vcmp.gt.s32.totalorder %v560, 7
    %v1825 = vsel %vm1824, 1, 0
    %1826 = vset.pattern.permute.xlu0 0
    %1827 = vperm.xlu0 %1826, %v1825
    %v1828 = vpop.permute.xlu0 %1827
    %vm1829 = vcmp.eq.s32.totalorder %v1828, 1
    %v1830 = vsel %vm1829, %v1823, %v1695
    %1831 = vst [vmem:[#allocation11] sm:$0xff] %v1830
    // Predicated region
    $region34: #{lstm_string_batched.1} parent=1 // pred_check
      _
    $region35: #{lstm_string_batched.1} parent=1 // pred_check_branch
      %1833 = sbr.rel (0) target = $region37
    $region36: #{lstm_string_batched.1} parent=1 // pred_region
      %1835 = vsyncadd [#allocation8], 0
      %s1837 = sshll.u32 [#allocation11], 4
      %s1838 = int_to_ptr.vmem [resolvable:$true] %s1837
      %s1839 = sshll.u32 %s7, 4
      %s1840 = int_to_ptr.hbm [resolvable:$true] %s1839
      %1842 = dma.vmem_to_hbm [thread:$0]  %s1838, 128, %s1840, [#allocation8]
    $region37: #{lstm_string_batched.1} parent=1 // pred_fallthru
      _
    // Predicated region
    $region38: #{lstm_string_batched.1} parent=1 // pred_check
      _
    $region39: #{lstm_string_batched.1} parent=1 // pred_check_branch
      %1844 = sbr.rel (0) target = $region41
    $region40: #{lstm_string_batched.1} parent=1 // pred_region
      %1846 = dma.done [#allocation8], 128
    $region41: #{lstm_string_batched.1} parent=1 // pred_fallthru
      _
    %1847 = vsyncpa [#allocation7], 1
    %1848 = vsyncpa [#allocation10], 1
    %1849 = vsyncpa [#allocation8], 1

</llo_original>
